<compile_context>
chip_gen: v5e
topology: v5e:2x2
jax: 0.10.0
libtpu: 0.0.40
codegen_flags: <defaults>
</compile_context>

<pallas_src>
import numpy as np

import jax
import jax.numpy as jnp
from jax import lax
from jax.experimental import pallas as pl
from jax.experimental.pallas import tpu as pltpu


NEG_BIG = -1e30  # bias for padded vocab columns: can never win the argmax


def _round_up(x, m):
    return (x + m - 1) // m * m


def _lstm_gates(gates, c):
    """Fused-gate LSTM nonlinearity. gates: [Bp, 4H] lane-dense, order (i, f, g, o)."""
    H = c.shape[-1]
    i = jax.nn.sigmoid(gates[:, 0 * H:1 * H])
    f = jax.nn.sigmoid(gates[:, 1 * H:2 * H])
    g = jnp.tanh(gates[:, 2 * H:3 * H])
    o = jax.nn.sigmoid(gates[:, 3 * H:4 * H])
    c_new = f * c + i * g
    h_new = o * jnp.tanh(c_new)
    return h_new, c_new


# ---------------------------------------------------------------------------
# Single fused kernel: encoder time loop + greedy decoder loop, all on-chip
# ---------------------------------------------------------------------------
def seq2seq_kernel(label0_ref,        # SMEM (Bp,) int32  : label[:, 0] (scalar prefetch)
                   enc_xproj_ref,     # (S, Bp, 4H) f32   : (enc_emb @ W_ih + b) gathered per token
                   enc_whh_ref,       # (H, 4H)
                   dec_tab_ref,       # (Vp, 4H)          : dec_emb @ W_ih (fused table)
                   dec_whh_ref,       # (H, 4H)
                   dec_b_ref,         # (1, 4H)
                   fcw_ref,           # (H, Vp)
                   fcb_ref,           # (1, Vp)           : padded cols = -1e30
                   out_ref):          # (L, Bp, Vp)
    S, Bp, _ = enc_xproj_ref.shape
    H = enc_whh_ref.shape[0]
    L, _, Vp = out_ref.shape

    # -------- encoder recurrence: h/c live in vregs as fori_loop carries --------
    def enc_step(t, carry):
        h, c = carry
        gates = enc_xproj_ref[t] + jnp.dot(h, enc_whh_ref[...],
                                           preferred_element_type=jnp.float32)
        return _lstm_gates(gates, c)

    h, c = lax.fori_loop(
        0, S, enc_step,
        (jnp.zeros((Bp, H), jnp.float32), jnp.zeros((Bp, H), jnp.float32)),
        unroll=True)

    # outputs[0] stays zero (the PyTorch loop starts writing at t=1)
    out_ref[0] = jnp.zeros((Bp, Vp), jnp.float32)

    # Initial one-hot built in-kernel from the SMEM token ids (no [Bp,Vp] HBM input).
    row = lax.broadcasted_iota(jnp.int32, (Bp, Vp), 0)
    col = lax.broadcasted_iota(jnp.int32, (Bp, Vp), 1)
    tok = jnp.zeros((Bp, Vp), jnp.int32)
    for b in range(Bp):                       # Bp = 8: tiny unrolled select chain
        tok = jnp.where(row == b, label0_ref[b], tok)
    oh = (col == tok).astype(jnp.float32)     # [Bp, Vp] one-hot of label[:, 0]

    # -------- decoder greedy loop: h/c/one-hot in vregs, logits straight to out --
    def dec_step(t, carry):
        h, c, oh_t = carry
        # Fused embedding + input projection: single [Bp,Vp]@[Vp,4H] lane-dense matmul
        # (one-hot row selection — numerically exact).
        gates = (jnp.dot(oh_t, dec_tab_ref[...], preferred_element_type=jnp.float32)
                 + jnp.dot(h, dec_whh_ref[...], preferred_element_type=jnp.float32)
                 + dec_b_ref[...])
        h_new, c_new = _lstm_gates(gates, c)

        # FC projection to lane-dense padded vocab logits; padded cols biased to -1e30.
        logits = (jnp.dot(h_new, fcw_ref[...], preferred_element_type=jnp.float32)
                  + fcb_ref[...])                              # [Bp, Vp]
        out_ref[t] = logits

        # Greedy argmax (first occurrence of max) -> next-step one-hot, all on-chip.
        m = jnp.max(logits, axis=1, keepdims=True)
        idx = jnp.min(jnp.where(logits == m, col, Vp), axis=1, keepdims=True)
        oh_new = (col == idx).astype(jnp.float32)
        return h_new, c_new, oh_new

    lax.fori_loop(1, L, dec_step, (h, c, oh), unroll=True)


def seq2seq_pallas(label0, enc_xproj, enc_whh, dec_tab, dec_whh, dec_b,
                   fc_w_pad, fc_b_pad, L):
    S, Bp, G = enc_xproj.shape               # G = 4H
    H = enc_whh.shape[0]
    Vp = fc_w_pad.shape[1]

    grid_spec = pltpu.PrefetchScalarGridSpec(
        num_scalar_prefetch=1,               # label0 -> SMEM
        grid=(1,),                           # single step: whole loop runs in-kernel
        in_specs=[
            pl.BlockSpec((S, Bp, G), lambda i, l0: (0, 0, 0)),   # encoder x-projection
            pl.BlockSpec((H, G), lambda i, l0: (0, 0)),          # enc W_hh  (resident)
            pl.BlockSpec((Vp, G), lambda i, l0: (0, 0)),         # dec emb@W_ih table
            pl.BlockSpec((H, G), lambda i, l0: (0, 0)),          # dec W_hh
            pl.BlockSpec((1, G), lambda i, l0: (0, 0)),          # dec bias
            pl.BlockSpec((H, Vp), lambda i, l0: (0, 0)),         # FC weight
            pl.BlockSpec((1, Vp), lambda i, l0: (0, 0)),         # FC bias (pad = -1e30)
        ],
        out_specs=pl.BlockSpec((L, Bp, Vp), lambda i, l0: (0, 0, 0)),
    )
    return pl.pallas_call(
        seq2seq_kernel,
        out_shape=jax.ShapeDtypeStruct((L, Bp, Vp), jnp.float32),
        grid_spec=grid_spec,
        compiler_params=pltpu.CompilerParams(
            dimension_semantics=("arbitrary",)),
    )(label0, enc_xproj, enc_whh, dec_tab, dec_whh, dec_b, fc_w_pad, fc_b_pad)


# ---------------------------------------------------------------------------
# Seq2Seq forward (mirrors the PyTorch module)
# ---------------------------------------------------------------------------
@jax.jit
def seq2seq_forward(label, text, params):
    B, L = label.shape
    H = params["enc_whh"].shape[0]
    V = params["dec_fc_w"].shape[1]
    Vp = max(128, _round_up(V, 128))     # lane-dense logits / argmax
    Bp = max(8, _round_up(B, 8))         # full sublane occupancy

    # ---- encoder input projection hoisted off the serial path:
    #      (emb @ W_ih)[token] == emb[token] @ W_ih  (row selection commutes exactly).
    enc_tab = jnp.dot(params["enc_emb"], params["enc_wih"],
                      precision=lax.Precision.HIGHEST) + params["enc_b"]   # [in_vocab, 4H]
    xproj = jnp.take(enc_tab, text, axis=0)                                 # [B, S, 4H]
    xproj = jnp.pad(xproj, ((0, Bp - B), (0, 0), (0, 0)))
    xproj = jnp.transpose(xproj, (1, 0, 2))                                 # [S, Bp, 4H]

    # ---- decoder: pre-fuse embedding and input projection into one table.
    dec_tab = jnp.dot(params["dec_emb"], params["dec_wih"],
                      precision=lax.Precision.HIGHEST)                      # [V, 4H]
    dec_tab = jnp.pad(dec_tab, ((0, Vp - V), (0, 0)))                       # [Vp, 4H]

    fc_w_pad = jnp.pad(params["dec_fc_w"], ((0, 0), (0, Vp - V)))
    fc_b_pad = jnp.pad(params["dec_fc_b"], ((0, 0), (0, Vp - V)),
                       constant_values=NEG_BIG)

    label0 = jnp.pad(label[:, 0], ((0, Bp - B),)).astype(jnp.int32)         # [Bp]

    out_pad = seq2seq_pallas(label0, xproj, params["enc_whh"],
                             dec_tab, params["dec_whh"], params["dec_b"],
                             fc_w_pad, fc_b_pad, L)                         # [L, Bp, Vp]
    # Padded batch rows / vocab columns are garbage by construction — slice them off.
    return out_pad[:, :B, :V]


# ---------------------------------------------------------------------------
# Pure-JAX reference (for correctness checking)
# ---------------------------------------------------------------------------
def _lstm_cell_ref(x, h, c, w_ih, w_hh, b):
    H = h.shape[-1]
    gates = (jnp.dot(x, w_ih, precision=lax.Precision.HIGHEST)
             + jnp.dot(h, w_hh, precision=lax.Precision.HIGHEST) + b)
    i = jax.nn.sigmoid(gates[:, :H])
    f = jax.nn.sigmoid(gates[:, H:2 * H])
    g = jnp.tanh(gates[:, 2 * H:3 * H])
    o = jax.nn.sigmoid(gates[:, 3 * H:])
    c_new = f * c + i * g
    return o * jnp.tanh(c_new), c_new


def seq2seq_reference(label, text, params):
    B, L = label.shape
    H = params["enc_whh"].shape[0]
    V = params["dec_fc_w"].shape[1]
    enc_x = jnp.take(params["enc_emb"], text, axis=0)
    h = jnp.zeros((B, H), jnp.float32)
    c = jnp.zeros((B, H), jnp.float32)
    for s in range(text.shape[1]):
        h, c = _lstm_cell_ref(enc_x[:, s], h, c,
                              params["enc_wih"], params["enc_whh"], params["enc_b"])
    outputs = [jnp.zeros((B, V), jnp.float32)]
    word = label[:, 0]
    for _ in range(1, L):
        x = jnp.take(params["dec_emb"], word, axis=0)
        h, c = _lstm_cell_ref(x, h, c,
                              params["dec_wih"], params["dec_whh"], params["dec_b"])
        logits = (jnp.dot(h, params["dec_fc_w"], precision=lax.Precision.HIGHEST)
                  + params["dec_fc_b"])
        outputs.append(logits)
        word = jnp.argmax(logits, axis=1)
    return jnp.stack(outputs, axis=0)


# ---------------------------------------------------------------------------
# Deterministic parameter construction (synthetic; fused-gate layout)
# ---------------------------------------------------------------------------
def init_params(key, in_vocab, out_vocab, emb_dim, hid_dim):
    ks = jax.random.split(key, 10)
    s = 1.0 / np.sqrt(hid_dim)

    def u(k, shape):
        return jax.random.uniform(k, shape, jnp.float32, -s, s)

    return {
        # encoder
        "enc_emb": jax.random.normal(ks[0], (in_vocab, emb_dim), jnp.float32) * 0.1,
        "enc_wih": u(ks[1], (emb_dim, 4 * hid_dim)),
        "enc_whh": u(ks[2], (hid_dim, 4 * hid_dim)),
        "enc_b":   u(ks[3], (1, 4 * hid_dim)),
        # decoder
        "dec_emb": jax.random.normal(ks[4], (out_vocab, emb_dim), jnp.float32) * 0.1,
        "dec_wih": u(ks[5], (emb_dim, 4 * hid_dim)),
        "dec_whh": u(ks[6], (hid_dim, 4 * hid_dim)),
        "dec_b":   u(ks[7], (1, 4 * hid_dim)),
        "dec_fc_w": u(ks[8], (hid_dim, out_vocab)),
        "dec_fc_b": u(ks[9], (1, out_vocab)),
    }


if __name__ == "__main__":
    B, L, S = 2, 8, 8                 # batch, label_length, source length
    IN_VOCAB, OUT_VOCAB = 40, 32
    EMB, HID = 16, 32

    key = jax.random.PRNGKey(0)
    k_par, k_lab, k_txt = jax.random.split(key, 3)

    params = init_params(k_par, IN_VOCAB, OUT_VOCAB, EMB, HID)
    label = jax.random.randint(k_lab, (B, L), 0, OUT_VOCAB, dtype=jnp.int32)
    text = jax.random.randint(k_txt, (B, S), 0, IN_VOCAB, dtype=jnp.int32)

    outputs = seq2seq_forward(label, text, params)
    jax.block_until_ready(outputs)

    assert outputs.shape == (L, B, OUT_VOCAB)
    assert bool(jnp.all(outputs[0] == 0.0))

    ref = seq2seq_reference(label, text, params)
    np.testing.assert_allclose(np.asarray(outputs), np.asarray(ref),
                               rtol=2e-3, atol=2e-3)

    print("KERNEL_OK")
</pallas_src>

<mosaic_0001>
module attributes {stable_mosaic.version = 11 : i64} {
  func.func @seq2seq_kernel(%arg0: i32, %arg1: memref<8xi32, #tpu.memory_space<smem>>, %arg2: memref<8x8x128xf32, #tpu.memory_space<vmem>>, %arg3: memref<32x128xf32, #tpu.memory_space<vmem>>, %arg4: memref<128x128xf32, #tpu.memory_space<vmem>>, %arg5: memref<32x128xf32, #tpu.memory_space<vmem>>, %arg6: memref<1x128xf32, #tpu.memory_space<vmem>>, %arg7: memref<32x128xf32, #tpu.memory_space<vmem>>, %arg8: memref<1x128xf32, #tpu.memory_space<vmem>>, %arg9: memref<8x8x128xf32, #tpu.memory_space<vmem>>) attributes {dimension_semantics = [#tpu.dimension_semantics<arbitrary>], iteration_bounds = array<i64: 1>, scalar_prefetch = 1 : i64, scratch_operands = 0 : i64, tpu.core_type = #tpu.core_type<tc>, window_params = [{pipeline_mode = #tpu.pipeline_mode<synchronous>, transform_indices = @transform_0, window_bounds = array<i64: 8, 8, 128>}, {pipeline_mode = #tpu.pipeline_mode<synchronous>, transform_indices = @transform_1, window_bounds = array<i64: 32, 128>}, {pipeline_mode = #tpu.pipeline_mode<synchronous>, transform_indices = @transform_2, window_bounds = array<i64: 128, 128>}, {pipeline_mode = #tpu.pipeline_mode<synchronous>, transform_indices = @transform_3, window_bounds = array<i64: 32, 128>}, {pipeline_mode = #tpu.pipeline_mode<synchronous>, transform_indices = @transform_4, window_bounds = array<i64: 1, 128>}, {pipeline_mode = #tpu.pipeline_mode<synchronous>, transform_indices = @transform_5, window_bounds = array<i64: 32, 128>}, {pipeline_mode = #tpu.pipeline_mode<synchronous>, transform_indices = @transform_6, window_bounds = array<i64: 1, 128>}, {pipeline_mode = #tpu.pipeline_mode<synchronous>, transform_indices = @transform_7, window_bounds = array<i64: 8, 8, 128>}]} {
    %cst = arith.constant 0.000000e+00 : f32
    %0 = vector.broadcast %cst : f32 to vector<8x32xf32>
    %cst_0 = arith.constant 0.000000e+00 : f32
    %1 = vector.broadcast %cst_0 : f32 to vector<8x32xf32>
    %c0_i32 = arith.constant 0 : i32
    %2 = arith.index_cast %c0_i32 : i32 to index
    %c0 = arith.constant 0 : index
    %c0_1 = arith.constant 0 : index
    %3 = vector.load %arg2[%2, %c0, %c0_1] : memref<8x8x128xf32, #tpu.memory_space<vmem>>, vector<1x8x128xf32>
    %4 = vector.shape_cast %3 : vector<1x8x128xf32> to vector<8x128xf32>
    %c0_2 = arith.constant 0 : index
    %c0_3 = arith.constant 0 : index
    %5 = vector.load %arg3[%c0_2, %c0_3] : memref<32x128xf32, #tpu.memory_space<vmem>>, vector<32x128xf32>
    %cst_4 = arith.constant dense<0.000000e+00> : vector<8x128xf32>
    %6 = tpu.matmul %0, %5, %cst_4 {dimension_numbers = #tpu.dot_dimension_numbers<[1], [0], [0], [1], [0, 0, 1, 1], [], []>} : vector<8x32xf32>, vector<32x128xf32>, vector<8x128xf32> -> vector<8x128xf32>
    %7 = arith.addf %4, %6 : vector<8x128xf32>
    %8 = vector.extract_strided_slice %7 {offsets = [0, 0], sizes = [8, 32], strides = [1, 1]} : vector<8x128xf32> to vector<8x32xf32>
    %9 = arith.negf %8 : vector<8x32xf32>
    %10 = math.exp %9 : vector<8x32xf32>
    %cst_5 = arith.constant 1.000000e+00 : f32
    %11 = vector.broadcast %cst_5 : f32 to vector<8x32xf32>
    %12 = arith.addf %11, %10 : vector<8x32xf32>
    %13 = arith.divf %11, %12 : vector<8x32xf32>
    %14 = vector.extract_strided_slice %7 {offsets = [0, 32], sizes = [8, 32], strides = [1, 1]} : vector<8x128xf32> to vector<8x32xf32>
    %15 = arith.negf %14 : vector<8x32xf32>
    %16 = math.exp %15 : vector<8x32xf32>
    %cst_6 = arith.constant 1.000000e+00 : f32
    %17 = vector.broadcast %cst_6 : f32 to vector<8x32xf32>
    %18 = arith.addf %17, %16 : vector<8x32xf32>
    %19 = arith.divf %17, %18 : vector<8x32xf32>
    %20 = vector.extract_strided_slice %7 {offsets = [0, 64], sizes = [8, 32], strides = [1, 1]} : vector<8x128xf32> to vector<8x32xf32>
    %21 = math.tanh %20 : vector<8x32xf32>
    %22 = vector.extract_strided_slice %7 {offsets = [0, 96], sizes = [8, 32], strides = [1, 1]} : vector<8x128xf32> to vector<8x32xf32>
    %23 = arith.negf %22 : vector<8x32xf32>
    %24 = math.exp %23 : vector<8x32xf32>
    %cst_7 = arith.constant 1.000000e+00 : f32
    %25 = vector.broadcast %cst_7 : f32 to vector<8x32xf32>
    %26 = arith.addf %25, %24 : vector<8x32xf32>
    %27 = arith.divf %25, %26 : vector<8x32xf32>
    %28 = arith.mulf %19, %1 : vector<8x32xf32>
    %29 = arith.mulf %13, %21 : vector<8x32xf32>
    %30 = arith.addf %28, %29 : vector<8x32xf32>
    %31 = math.tanh %30 : vector<8x32xf32>
    %32 = arith.mulf %27, %31 : vector<8x32xf32>
    %c1_i32 = arith.constant 1 : i32
    %33 = arith.index_cast %c1_i32 : i32 to index
    %c0_8 = arith.constant 0 : index
    %c0_9 = arith.constant 0 : index
    %34 = vector.load %arg2[%33, %c0_8, %c0_9] : memref<8x8x128xf32, #tpu.memory_space<vmem>>, vector<1x8x128xf32>
    %35 = vector.shape_cast %34 : vector<1x8x128xf32> to vector<8x128xf32>
    %c0_10 = arith.constant 0 : index
    %c0_11 = arith.constant 0 : index
    %36 = vector.load %arg3[%c0_10, %c0_11] : memref<32x128xf32, #tpu.memory_space<vmem>>, vector<32x128xf32>
    %cst_12 = arith.constant dense<0.000000e+00> : vector<8x128xf32>
    %37 = tpu.matmul %32, %36, %cst_12 {dimension_numbers = #tpu.dot_dimension_numbers<[1], [0], [0], [1], [0, 0, 1, 1], [], []>} : vector<8x32xf32>, vector<32x128xf32>, vector<8x128xf32> -> vector<8x128xf32>
    %38 = arith.addf %35, %37 : vector<8x128xf32>
    %39 = vector.extract_strided_slice %38 {offsets = [0, 0], sizes = [8, 32], strides = [1, 1]} : vector<8x128xf32> to vector<8x32xf32>
    %40 = arith.negf %39 : vector<8x32xf32>
    %41 = math.exp %40 : vector<8x32xf32>
    %cst_13 = arith.constant 1.000000e+00 : f32
    %42 = vector.broadcast %cst_13 : f32 to vector<8x32xf32>
    %43 = arith.addf %42, %41 : vector<8x32xf32>
    %44 = arith.divf %42, %43 : vector<8x32xf32>
    %45 = vector.extract_strided_slice %38 {offsets = [0, 32], sizes = [8, 32], strides = [1, 1]} : vector<8x128xf32> to vector<8x32xf32>
    %46 = arith.negf %45 : vector<8x32xf32>
    %47 = math.exp %46 : vector<8x32xf32>
    %cst_14 = arith.constant 1.000000e+00 : f32
    %48 = vector.broadcast %cst_14 : f32 to vector<8x32xf32>
    %49 = arith.addf %48, %47 : vector<8x32xf32>
    %50 = arith.divf %48, %49 : vector<8x32xf32>
    %51 = vector.extract_strided_slice %38 {offsets = [0, 64], sizes = [8, 32], strides = [1, 1]} : vector<8x128xf32> to vector<8x32xf32>
    %52 = math.tanh %51 : vector<8x32xf32>
    %53 = vector.extract_strided_slice %38 {offsets = [0, 96], sizes = [8, 32], strides = [1, 1]} : vector<8x128xf32> to vector<8x32xf32>
    %54 = arith.negf %53 : vector<8x32xf32>
    %55 = math.exp %54 : vector<8x32xf32>
    %cst_15 = arith.constant 1.000000e+00 : f32
    %56 = vector.broadcast %cst_15 : f32 to vector<8x32xf32>
    %57 = arith.addf %56, %55 : vector<8x32xf32>
    %58 = arith.divf %56, %57 : vector<8x32xf32>
    %59 = arith.mulf %50, %30 : vector<8x32xf32>
    %60 = arith.mulf %44, %52 : vector<8x32xf32>
    %61 = arith.addf %59, %60 : vector<8x32xf32>
    %62 = math.tanh %61 : vector<8x32xf32>
    %63 = arith.mulf %58, %62 : vector<8x32xf32>
    %c2_i32 = arith.constant 2 : i32
    %64 = arith.index_cast %c2_i32 : i32 to index
    %c0_16 = arith.constant 0 : index
    %c0_17 = arith.constant 0 : index
    %65 = vector.load %arg2[%64, %c0_16, %c0_17] : memref<8x8x128xf32, #tpu.memory_space<vmem>>, vector<1x8x128xf32>
    %66 = vector.shape_cast %65 : vector<1x8x128xf32> to vector<8x128xf32>
    %c0_18 = arith.constant 0 : index
    %c0_19 = arith.constant 0 : index
    %67 = vector.load %arg3[%c0_18, %c0_19] : memref<32x128xf32, #tpu.memory_space<vmem>>, vector<32x128xf32>
    %cst_20 = arith.constant dense<0.000000e+00> : vector<8x128xf32>
    %68 = tpu.matmul %63, %67, %cst_20 {dimension_numbers = #tpu.dot_dimension_numbers<[1], [0], [0], [1], [0, 0, 1, 1], [], []>} : vector<8x32xf32>, vector<32x128xf32>, vector<8x128xf32> -> vector<8x128xf32>
    %69 = arith.addf %66, %68 : vector<8x128xf32>
    %70 = vector.extract_strided_slice %69 {offsets = [0, 0], sizes = [8, 32], strides = [1, 1]} : vector<8x128xf32> to vector<8x32xf32>
    %71 = arith.negf %70 : vector<8x32xf32>
    %72 = math.exp %71 : vector<8x32xf32>
    %cst_21 = arith.constant 1.000000e+00 : f32
    %73 = vector.broadcast %cst_21 : f32 to vector<8x32xf32>
    %74 = arith.addf %73, %72 : vector<8x32xf32>
    %75 = arith.divf %73, %74 : vector<8x32xf32>
    %76 = vector.extract_strided_slice %69 {offsets = [0, 32], sizes = [8, 32], strides = [1, 1]} : vector<8x128xf32> to vector<8x32xf32>
    %77 = arith.negf %76 : vector<8x32xf32>
    %78 = math.exp %77 : vector<8x32xf32>
    %cst_22 = arith.constant 1.000000e+00 : f32
    %79 = vector.broadcast %cst_22 : f32 to vector<8x32xf32>
    %80 = arith.addf %79, %78 : vector<8x32xf32>
    %81 = arith.divf %79, %80 : vector<8x32xf32>
    %82 = vector.extract_strided_slice %69 {offsets = [0, 64], sizes = [8, 32], strides = [1, 1]} : vector<8x128xf32> to vector<8x32xf32>
    %83 = math.tanh %82 : vector<8x32xf32>
    %84 = vector.extract_strided_slice %69 {offsets = [0, 96], sizes = [8, 32], strides = [1, 1]} : vector<8x128xf32> to vector<8x32xf32>
    %85 = arith.negf %84 : vector<8x32xf32>
    %86 = math.exp %85 : vector<8x32xf32>
    %cst_23 = arith.constant 1.000000e+00 : f32
    %87 = vector.broadcast %cst_23 : f32 to vector<8x32xf32>
    %88 = arith.addf %87, %86 : vector<8x32xf32>
    %89 = arith.divf %87, %88 : vector<8x32xf32>
    %90 = arith.mulf %81, %61 : vector<8x32xf32>
    %91 = arith.mulf %75, %83 : vector<8x32xf32>
    %92 = arith.addf %90, %91 : vector<8x32xf32>
    %93 = math.tanh %92 : vector<8x32xf32>
    %94 = arith.mulf %89, %93 : vector<8x32xf32>
    %c3_i32 = arith.constant 3 : i32
    %95 = arith.index_cast %c3_i32 : i32 to index
    %c0_24 = arith.constant 0 : index
    %c0_25 = arith.constant 0 : index
    %96 = vector.load %arg2[%95, %c0_24, %c0_25] : memref<8x8x128xf32, #tpu.memory_space<vmem>>, vector<1x8x128xf32>
    %97 = vector.shape_cast %96 : vector<1x8x128xf32> to vector<8x128xf32>
    %c0_26 = arith.constant 0 : index
    %c0_27 = arith.constant 0 : index
    %98 = vector.load %arg3[%c0_26, %c0_27] : memref<32x128xf32, #tpu.memory_space<vmem>>, vector<32x128xf32>
    %cst_28 = arith.constant dense<0.000000e+00> : vector<8x128xf32>
    %99 = tpu.matmul %94, %98, %cst_28 {dimension_numbers = #tpu.dot_dimension_numbers<[1], [0], [0], [1], [0, 0, 1, 1], [], []>} : vector<8x32xf32>, vector<32x128xf32>, vector<8x128xf32> -> vector<8x128xf32>
    %100 = arith.addf %97, %99 : vector<8x128xf32>
    %101 = vector.extract_strided_slice %100 {offsets = [0, 0], sizes = [8, 32], strides = [1, 1]} : vector<8x128xf32> to vector<8x32xf32>
    %102 = arith.negf %101 : vector<8x32xf32>
    %103 = math.exp %102 : vector<8x32xf32>
    %cst_29 = arith.constant 1.000000e+00 : f32
    %104 = vector.broadcast %cst_29 : f32 to vector<8x32xf32>
    %105 = arith.addf %104, %103 : vector<8x32xf32>
    %106 = arith.divf %104, %105 : vector<8x32xf32>
    %107 = vector.extract_strided_slice %100 {offsets = [0, 32], sizes = [8, 32], strides = [1, 1]} : vector<8x128xf32> to vector<8x32xf32>
    %108 = arith.negf %107 : vector<8x32xf32>
    %109 = math.exp %108 : vector<8x32xf32>
    %cst_30 = arith.constant 1.000000e+00 : f32
    %110 = vector.broadcast %cst_30 : f32 to vector<8x32xf32>
    %111 = arith.addf %110, %109 : vector<8x32xf32>
    %112 = arith.divf %110, %111 : vector<8x32xf32>
    %113 = vector.extract_strided_slice %100 {offsets = [0, 64], sizes = [8, 32], strides = [1, 1]} : vector<8x128xf32> to vector<8x32xf32>
    %114 = math.tanh %113 : vector<8x32xf32>
    %115 = vector.extract_strided_slice %100 {offsets = [0, 96], sizes = [8, 32], strides = [1, 1]} : vector<8x128xf32> to vector<8x32xf32>
    %116 = arith.negf %115 : vector<8x32xf32>
    %117 = math.exp %116 : vector<8x32xf32>
    %cst_31 = arith.constant 1.000000e+00 : f32
    %118 = vector.broadcast %cst_31 : f32 to vector<8x32xf32>
    %119 = arith.addf %118, %117 : vector<8x32xf32>
    %120 = arith.divf %118, %119 : vector<8x32xf32>
    %121 = arith.mulf %112, %92 : vector<8x32xf32>
    %122 = arith.mulf %106, %114 : vector<8x32xf32>
    %123 = arith.addf %121, %122 : vector<8x32xf32>
    %124 = math.tanh %123 : vector<8x32xf32>
    %125 = arith.mulf %120, %124 : vector<8x32xf32>
    %c4_i32 = arith.constant 4 : i32
    %126 = arith.index_cast %c4_i32 : i32 to index
    %c0_32 = arith.constant 0 : index
    %c0_33 = arith.constant 0 : index
    %127 = vector.load %arg2[%126, %c0_32, %c0_33] : memref<8x8x128xf32, #tpu.memory_space<vmem>>, vector<1x8x128xf32>
    %128 = vector.shape_cast %127 : vector<1x8x128xf32> to vector<8x128xf32>
    %c0_34 = arith.constant 0 : index
    %c0_35 = arith.constant 0 : index
    %129 = vector.load %arg3[%c0_34, %c0_35] : memref<32x128xf32, #tpu.memory_space<vmem>>, vector<32x128xf32>
    %cst_36 = arith.constant dense<0.000000e+00> : vector<8x128xf32>
    %130 = tpu.matmul %125, %129, %cst_36 {dimension_numbers = #tpu.dot_dimension_numbers<[1], [0], [0], [1], [0, 0, 1, 1], [], []>} : vector<8x32xf32>, vector<32x128xf32>, vector<8x128xf32> -> vector<8x128xf32>
    %131 = arith.addf %128, %130 : vector<8x128xf32>
    %132 = vector.extract_strided_slice %131 {offsets = [0, 0], sizes = [8, 32], strides = [1, 1]} : vector<8x128xf32> to vector<8x32xf32>
    %133 = arith.negf %132 : vector<8x32xf32>
    %134 = math.exp %133 : vector<8x32xf32>
    %cst_37 = arith.constant 1.000000e+00 : f32
    %135 = vector.broadcast %cst_37 : f32 to vector<8x32xf32>
    %136 = arith.addf %135, %134 : vector<8x32xf32>
    %137 = arith.divf %135, %136 : vector<8x32xf32>
    %138 = vector.extract_strided_slice %131 {offsets = [0, 32], sizes = [8, 32], strides = [1, 1]} : vector<8x128xf32> to vector<8x32xf32>
    %139 = arith.negf %138 : vector<8x32xf32>
    %140 = math.exp %139 : vector<8x32xf32>
    %cst_38 = arith.constant 1.000000e+00 : f32
    %141 = vector.broadcast %cst_38 : f32 to vector<8x32xf32>
    %142 = arith.addf %141, %140 : vector<8x32xf32>
    %143 = arith.divf %141, %142 : vector<8x32xf32>
    %144 = vector.extract_strided_slice %131 {offsets = [0, 64], sizes = [8, 32], strides = [1, 1]} : vector<8x128xf32> to vector<8x32xf32>
    %145 = math.tanh %144 : vector<8x32xf32>
    %146 = vector.extract_strided_slice %131 {offsets = [0, 96], sizes = [8, 32], strides = [1, 1]} : vector<8x128xf32> to vector<8x32xf32>
    %147 = arith.negf %146 : vector<8x32xf32>
    %148 = math.exp %147 : vector<8x32xf32>
    %cst_39 = arith.constant 1.000000e+00 : f32
    %149 = vector.broadcast %cst_39 : f32 to vector<8x32xf32>
    %150 = arith.addf %149, %148 : vector<8x32xf32>
    %151 = arith.divf %149, %150 : vector<8x32xf32>
    %152 = arith.mulf %143, %123 : vector<8x32xf32>
    %153 = arith.mulf %137, %145 : vector<8x32xf32>
    %154 = arith.addf %152, %153 : vector<8x32xf32>
    %155 = math.tanh %154 : vector<8x32xf32>
    %156 = arith.mulf %151, %155 : vector<8x32xf32>
    %c5_i32 = arith.constant 5 : i32
    %157 = arith.index_cast %c5_i32 : i32 to index
    %c0_40 = arith.constant 0 : index
    %c0_41 = arith.constant 0 : index
    %158 = vector.load %arg2[%157, %c0_40, %c0_41] : memref<8x8x128xf32, #tpu.memory_space<vmem>>, vector<1x8x128xf32>
    %159 = vector.shape_cast %158 : vector<1x8x128xf32> to vector<8x128xf32>
    %c0_42 = arith.constant 0 : index
    %c0_43 = arith.constant 0 : index
    %160 = vector.load %arg3[%c0_42, %c0_43] : memref<32x128xf32, #tpu.memory_space<vmem>>, vector<32x128xf32>
    %cst_44 = arith.constant dense<0.000000e+00> : vector<8x128xf32>
    %161 = tpu.matmul %156, %160, %cst_44 {dimension_numbers = #tpu.dot_dimension_numbers<[1], [0], [0], [1], [0, 0, 1, 1], [], []>} : vector<8x32xf32>, vector<32x128xf32>, vector<8x128xf32> -> vector<8x128xf32>
    %162 = arith.addf %159, %161 : vector<8x128xf32>
    %163 = vector.extract_strided_slice %162 {offsets = [0, 0], sizes = [8, 32], strides = [1, 1]} : vector<8x128xf32> to vector<8x32xf32>
    %164 = arith.negf %163 : vector<8x32xf32>
    %165 = math.exp %164 : vector<8x32xf32>
    %cst_45 = arith.constant 1.000000e+00 : f32
    %166 = vector.broadcast %cst_45 : f32 to vector<8x32xf32>
    %167 = arith.addf %166, %165 : vector<8x32xf32>
    %168 = arith.divf %166, %167 : vector<8x32xf32>
    %169 = vector.extract_strided_slice %162 {offsets = [0, 32], sizes = [8, 32], strides = [1, 1]} : vector<8x128xf32> to vector<8x32xf32>
    %170 = arith.negf %169 : vector<8x32xf32>
    %171 = math.exp %170 : vector<8x32xf32>
    %cst_46 = arith.constant 1.000000e+00 : f32
    %172 = vector.broadcast %cst_46 : f32 to vector<8x32xf32>
    %173 = arith.addf %172, %171 : vector<8x32xf32>
    %174 = arith.divf %172, %173 : vector<8x32xf32>
    %175 = vector.extract_strided_slice %162 {offsets = [0, 64], sizes = [8, 32], strides = [1, 1]} : vector<8x128xf32> to vector<8x32xf32>
    %176 = math.tanh %175 : vector<8x32xf32>
    %177 = vector.extract_strided_slice %162 {offsets = [0, 96], sizes = [8, 32], strides = [1, 1]} : vector<8x128xf32> to vector<8x32xf32>
    %178 = arith.negf %177 : vector<8x32xf32>
    %179 = math.exp %178 : vector<8x32xf32>
    %cst_47 = arith.constant 1.000000e+00 : f32
    %180 = vector.broadcast %cst_47 : f32 to vector<8x32xf32>
    %181 = arith.addf %180, %179 : vector<8x32xf32>
    %182 = arith.divf %180, %181 : vector<8x32xf32>
    %183 = arith.mulf %174, %154 : vector<8x32xf32>
    %184 = arith.mulf %168, %176 : vector<8x32xf32>
    %185 = arith.addf %183, %184 : vector<8x32xf32>
    %186 = math.tanh %185 : vector<8x32xf32>
    %187 = arith.mulf %182, %186 : vector<8x32xf32>
    %c6_i32 = arith.constant 6 : i32
    %188 = arith.index_cast %c6_i32 : i32 to index
    %c0_48 = arith.constant 0 : index
    %c0_49 = arith.constant 0 : index
    %189 = vector.load %arg2[%188, %c0_48, %c0_49] : memref<8x8x128xf32, #tpu.memory_space<vmem>>, vector<1x8x128xf32>
    %190 = vector.shape_cast %189 : vector<1x8x128xf32> to vector<8x128xf32>
    %c0_50 = arith.constant 0 : index
    %c0_51 = arith.constant 0 : index
    %191 = vector.load %arg3[%c0_50, %c0_51] : memref<32x128xf32, #tpu.memory_space<vmem>>, vector<32x128xf32>
    %cst_52 = arith.constant dense<0.000000e+00> : vector<8x128xf32>
    %192 = tpu.matmul %187, %191, %cst_52 {dimension_numbers = #tpu.dot_dimension_numbers<[1], [0], [0], [1], [0, 0, 1, 1], [], []>} : vector<8x32xf32>, vector<32x128xf32>, vector<8x128xf32> -> vector<8x128xf32>
    %193 = arith.addf %190, %192 : vector<8x128xf32>
    %194 = vector.extract_strided_slice %193 {offsets = [0, 0], sizes = [8, 32], strides = [1, 1]} : vector<8x128xf32> to vector<8x32xf32>
    %195 = arith.negf %194 : vector<8x32xf32>
    %196 = math.exp %195 : vector<8x32xf32>
    %cst_53 = arith.constant 1.000000e+00 : f32
    %197 = vector.broadcast %cst_53 : f32 to vector<8x32xf32>
    %198 = arith.addf %197, %196 : vector<8x32xf32>
    %199 = arith.divf %197, %198 : vector<8x32xf32>
    %200 = vector.extract_strided_slice %193 {offsets = [0, 32], sizes = [8, 32], strides = [1, 1]} : vector<8x128xf32> to vector<8x32xf32>
    %201 = arith.negf %200 : vector<8x32xf32>
    %202 = math.exp %201 : vector<8x32xf32>
    %cst_54 = arith.constant 1.000000e+00 : f32
    %203 = vector.broadcast %cst_54 : f32 to vector<8x32xf32>
    %204 = arith.addf %203, %202 : vector<8x32xf32>
    %205 = arith.divf %203, %204 : vector<8x32xf32>
    %206 = vector.extract_strided_slice %193 {offsets = [0, 64], sizes = [8, 32], strides = [1, 1]} : vector<8x128xf32> to vector<8x32xf32>
    %207 = math.tanh %206 : vector<8x32xf32>
    %208 = vector.extract_strided_slice %193 {offsets = [0, 96], sizes = [8, 32], strides = [1, 1]} : vector<8x128xf32> to vector<8x32xf32>
    %209 = arith.negf %208 : vector<8x32xf32>
    %210 = math.exp %209 : vector<8x32xf32>
    %cst_55 = arith.constant 1.000000e+00 : f32
    %211 = vector.broadcast %cst_55 : f32 to vector<8x32xf32>
    %212 = arith.addf %211, %210 : vector<8x32xf32>
    %213 = arith.divf %211, %212 : vector<8x32xf32>
    %214 = arith.mulf %205, %185 : vector<8x32xf32>
    %215 = arith.mulf %199, %207 : vector<8x32xf32>
    %216 = arith.addf %214, %215 : vector<8x32xf32>
    %217 = math.tanh %216 : vector<8x32xf32>
    %218 = arith.mulf %213, %217 : vector<8x32xf32>
    %c7_i32 = arith.constant 7 : i32
    %219 = arith.index_cast %c7_i32 : i32 to index
    %c0_56 = arith.constant 0 : index
    %c0_57 = arith.constant 0 : index
    %220 = vector.load %arg2[%219, %c0_56, %c0_57] : memref<8x8x128xf32, #tpu.memory_space<vmem>>, vector<1x8x128xf32>
    %221 = vector.shape_cast %220 : vector<1x8x128xf32> to vector<8x128xf32>
    %c0_58 = arith.constant 0 : index
    %c0_59 = arith.constant 0 : index
    %222 = vector.load %arg3[%c0_58, %c0_59] : memref<32x128xf32, #tpu.memory_space<vmem>>, vector<32x128xf32>
    %cst_60 = arith.constant dense<0.000000e+00> : vector<8x128xf32>
    %223 = tpu.matmul %218, %222, %cst_60 {dimension_numbers = #tpu.dot_dimension_numbers<[1], [0], [0], [1], [0, 0, 1, 1], [], []>} : vector<8x32xf32>, vector<32x128xf32>, vector<8x128xf32> -> vector<8x128xf32>
    %224 = arith.addf %221, %223 : vector<8x128xf32>
    %225 = vector.extract_strided_slice %224 {offsets = [0, 0], sizes = [8, 32], strides = [1, 1]} : vector<8x128xf32> to vector<8x32xf32>
    %226 = arith.negf %225 : vector<8x32xf32>
    %227 = math.exp %226 : vector<8x32xf32>
    %cst_61 = arith.constant 1.000000e+00 : f32
    %228 = vector.broadcast %cst_61 : f32 to vector<8x32xf32>
    %229 = arith.addf %228, %227 : vector<8x32xf32>
    %230 = arith.divf %228, %229 : vector<8x32xf32>
    %231 = vector.extract_strided_slice %224 {offsets = [0, 32], sizes = [8, 32], strides = [1, 1]} : vector<8x128xf32> to vector<8x32xf32>
    %232 = arith.negf %231 : vector<8x32xf32>
    %233 = math.exp %232 : vector<8x32xf32>
    %cst_62 = arith.constant 1.000000e+00 : f32
    %234 = vector.broadcast %cst_62 : f32 to vector<8x32xf32>
    %235 = arith.addf %234, %233 : vector<8x32xf32>
    %236 = arith.divf %234, %235 : vector<8x32xf32>
    %237 = vector.extract_strided_slice %224 {offsets = [0, 64], sizes = [8, 32], strides = [1, 1]} : vector<8x128xf32> to vector<8x32xf32>
    %238 = math.tanh %237 : vector<8x32xf32>
    %239 = vector.extract_strided_slice %224 {offsets = [0, 96], sizes = [8, 32], strides = [1, 1]} : vector<8x128xf32> to vector<8x32xf32>
    %240 = arith.negf %239 : vector<8x32xf32>
    %241 = math.exp %240 : vector<8x32xf32>
    %cst_63 = arith.constant 1.000000e+00 : f32
    %242 = vector.broadcast %cst_63 : f32 to vector<8x32xf32>
    %243 = arith.addf %242, %241 : vector<8x32xf32>
    %244 = arith.divf %242, %243 : vector<8x32xf32>
    %245 = arith.mulf %236, %216 : vector<8x32xf32>
    %246 = arith.mulf %230, %238 : vector<8x32xf32>
    %247 = arith.addf %245, %246 : vector<8x32xf32>
    %248 = math.tanh %247 : vector<8x32xf32>
    %249 = arith.mulf %244, %248 : vector<8x32xf32>
    %c8_i32 = arith.constant 8 : i32
    %cst_64 = arith.constant 0.000000e+00 : f32
    %250 = vector.broadcast %cst_64 : f32 to vector<8x128xf32>
    %c0_65 = arith.constant 0 : index
    %c0_66 = arith.constant 0 : index
    %c0_67 = arith.constant 0 : index
    %251 = vector.load %arg9[%c0_65, %c0_66, %c0_67] : memref<8x8x128xf32, #tpu.memory_space<vmem>>, vector<1x8x128xf32>
    %252 = vector.shape_cast %251 : vector<1x8x128xf32> to vector<8x128xf32>
    %253 = vector.shape_cast %250 : vector<8x128xf32> to vector<1x8x128xf32>
    tpu.vector_store %arg9[%c0_65, %c0_66, %c0_67], %253 {strides = array<i32>} : memref<8x8x128xf32, #tpu.memory_space<vmem>>, vector<1x8x128xf32>,
    %254 = tpu.iota {dimensions = array<i32: 0>} : vector<8x128xi32>
    %255 = tpu.iota {dimensions = array<i32: 1>} : vector<8x128xi32>
    %c0_i32_68 = arith.constant 0 : i32
    %256 = vector.broadcast %c0_i32_68 : i32 to vector<8x128xi32>
    %c0_i32_69 = arith.constant 0 : i32
    %257 = vector.broadcast %c0_i32_69 : i32 to vector<8x128xi32>
    %258 = arith.cmpi eq, %254, %257 : vector<8x128xi32>
    %c0_70 = arith.constant 0 : index
    %259 = memref.load %arg1[%c0_70] : memref<8xi32, #tpu.memory_space<smem>>
    %260 = vector.broadcast %259 : i32 to vector<8x128xi32>
    %261 = arith.select %258, %260, %256 : vector<8x128xi1>, vector<8x128xi32>
    %c1_i32_71 = arith.constant 1 : i32
    %262 = vector.broadcast %c1_i32_71 : i32 to vector<8x128xi32>
    %263 = arith.cmpi eq, %254, %262 : vector<8x128xi32>
    %c1 = arith.constant 1 : index
    %264 = memref.load %arg1[%c1] : memref<8xi32, #tpu.memory_space<smem>>
    %265 = vector.broadcast %264 : i32 to vector<8x128xi32>
    %266 = arith.select %263, %265, %261 : vector<8x128xi1>, vector<8x128xi32>
    %c2_i32_72 = arith.constant 2 : i32
    %267 = vector.broadcast %c2_i32_72 : i32 to vector<8x128xi32>
    %268 = arith.cmpi eq, %254, %267 : vector<8x128xi32>
    %c2 = arith.constant 2 : index
    %269 = memref.load %arg1[%c2] : memref<8xi32, #tpu.memory_space<smem>>
    %270 = vector.broadcast %269 : i32 to vector<8x128xi32>
    %271 = arith.select %268, %270, %266 : vector<8x128xi1>, vector<8x128xi32>
    %c3_i32_73 = arith.constant 3 : i32
    %272 = vector.broadcast %c3_i32_73 : i32 to vector<8x128xi32>
    %273 = arith.cmpi eq, %254, %272 : vector<8x128xi32>
    %c3 = arith.constant 3 : index
    %274 = memref.load %arg1[%c3] : memref<8xi32, #tpu.memory_space<smem>>
    %275 = vector.broadcast %274 : i32 to vector<8x128xi32>
    %276 = arith.select %273, %275, %271 : vector<8x128xi1>, vector<8x128xi32>
    %c4_i32_74 = arith.constant 4 : i32
    %277 = vector.broadcast %c4_i32_74 : i32 to vector<8x128xi32>
    %278 = arith.cmpi eq, %254, %277 : vector<8x128xi32>
    %c4 = arith.constant 4 : index
    %279 = memref.load %arg1[%c4] : memref<8xi32, #tpu.memory_space<smem>>
    %280 = vector.broadcast %279 : i32 to vector<8x128xi32>
    %281 = arith.select %278, %280, %276 : vector<8x128xi1>, vector<8x128xi32>
    %c5_i32_75 = arith.constant 5 : i32
    %282 = vector.broadcast %c5_i32_75 : i32 to vector<8x128xi32>
    %283 = arith.cmpi eq, %254, %282 : vector<8x128xi32>
    %c5 = arith.constant 5 : index
    %284 = memref.load %arg1[%c5] : memref<8xi32, #tpu.memory_space<smem>>
    %285 = vector.broadcast %284 : i32 to vector<8x128xi32>
    %286 = arith.select %283, %285, %281 : vector<8x128xi1>, vector<8x128xi32>
    %c6_i32_76 = arith.constant 6 : i32
    %287 = vector.broadcast %c6_i32_76 : i32 to vector<8x128xi32>
    %288 = arith.cmpi eq, %254, %287 : vector<8x128xi32>
    %c6 = arith.constant 6 : index
    %289 = memref.load %arg1[%c6] : memref<8xi32, #tpu.memory_space<smem>>
    %290 = vector.broadcast %289 : i32 to vector<8x128xi32>
    %291 = arith.select %288, %290, %286 : vector<8x128xi1>, vector<8x128xi32>
    %c7_i32_77 = arith.constant 7 : i32
    %292 = vector.broadcast %c7_i32_77 : i32 to vector<8x128xi32>
    %293 = arith.cmpi eq, %254, %292 : vector<8x128xi32>
    %c7 = arith.constant 7 : index
    %294 = memref.load %arg1[%c7] : memref<8xi32, #tpu.memory_space<smem>>
    %295 = vector.broadcast %294 : i32 to vector<8x128xi32>
    %296 = arith.select %293, %295, %291 : vector<8x128xi1>, vector<8x128xi32>
    %297 = arith.cmpi eq, %255, %296 : vector<8x128xi32>
    %298 = arith.extui %297 : vector<8x128xi1> to vector<8x128xi32>
    %299 = arith.sitofp %298 : vector<8x128xi32> to vector<8x128xf32>
    %c1_i32_78 = arith.constant 1 : i32
    %c0_79 = arith.constant 0 : index
    %c0_80 = arith.constant 0 : index
    %300 = vector.load %arg4[%c0_79, %c0_80] : memref<128x128xf32, #tpu.memory_space<vmem>>, vector<128x128xf32>
    %cst_81 = arith.constant dense<0.000000e+00> : vector<8x128xf32>
    %301 = tpu.matmul %299, %300, %cst_81 {dimension_numbers = #tpu.dot_dimension_numbers<[1], [0], [0], [1], [0, 0, 1, 1], [], []>} : vector<8x128xf32>, vector<128x128xf32>, vector<8x128xf32> -> vector<8x128xf32>
    %c0_82 = arith.constant 0 : index
    %c0_83 = arith.constant 0 : index
    %302 = vector.load %arg5[%c0_82, %c0_83] : memref<32x128xf32, #tpu.memory_space<vmem>>, vector<32x128xf32>
    %cst_84 = arith.constant dense<0.000000e+00> : vector<8x128xf32>
    %303 = tpu.matmul %249, %302, %cst_84 {dimension_numbers = #tpu.dot_dimension_numbers<[1], [0], [0], [1], [0, 0, 1, 1], [], []>} : vector<8x32xf32>, vector<32x128xf32>, vector<8x128xf32> -> vector<8x128xf32>
    %304 = arith.addf %301, %303 : vector<8x128xf32>
    %c0_85 = arith.constant 0 : index
    %c0_86 = arith.constant 0 : index
    %305 = vector.load %arg6[%c0_85, %c0_86] : memref<1x128xf32, #tpu.memory_space<vmem>>, vector<1x128xf32>
    %306 = vector.broadcast %305 : vector<1x128xf32> to vector<8x128xf32>
    %307 = arith.addf %304, %306 : vector<8x128xf32>
    %308 = vector.extract_strided_slice %307 {offsets = [0, 0], sizes = [8, 32], strides = [1, 1]} : vector<8x128xf32> to vector<8x32xf32>
    %309 = arith.negf %308 : vector<8x32xf32>
    %310 = math.exp %309 : vector<8x32xf32>
    %cst_87 = arith.constant 1.000000e+00 : f32
    %311 = vector.broadcast %cst_87 : f32 to vector<8x32xf32>
    %312 = arith.addf %311, %310 : vector<8x32xf32>
    %313 = arith.divf %311, %312 : vector<8x32xf32>
    %314 = vector.extract_strided_slice %307 {offsets = [0, 32], sizes = [8, 32], strides = [1, 1]} : vector<8x128xf32> to vector<8x32xf32>
    %315 = arith.negf %314 : vector<8x32xf32>
    %316 = math.exp %315 : vector<8x32xf32>
    %cst_88 = arith.constant 1.000000e+00 : f32
    %317 = vector.broadcast %cst_88 : f32 to vector<8x32xf32>
    %318 = arith.addf %317, %316 : vector<8x32xf32>
    %319 = arith.divf %317, %318 : vector<8x32xf32>
    %320 = vector.extract_strided_slice %307 {offsets = [0, 64], sizes = [8, 32], strides = [1, 1]} : vector<8x128xf32> to vector<8x32xf32>
    %321 = math.tanh %320 : vector<8x32xf32>
    %322 = vector.extract_strided_slice %307 {offsets = [0, 96], sizes = [8, 32], strides = [1, 1]} : vector<8x128xf32> to vector<8x32xf32>
    %323 = arith.negf %322 : vector<8x32xf32>
    %324 = math.exp %323 : vector<8x32xf32>
    %cst_89 = arith.constant 1.000000e+00 : f32
    %325 = vector.broadcast %cst_89 : f32 to vector<8x32xf32>
    %326 = arith.addf %325, %324 : vector<8x32xf32>
    %327 = arith.divf %325, %326 : vector<8x32xf32>
    %328 = arith.mulf %319, %247 : vector<8x32xf32>
    %329 = arith.mulf %313, %321 : vector<8x32xf32>
    %330 = arith.addf %328, %329 : vector<8x32xf32>
    %331 = math.tanh %330 : vector<8x32xf32>
    %332 = arith.mulf %327, %331 : vector<8x32xf32>
    %c0_90 = arith.constant 0 : index
    %c0_91 = arith.constant 0 : index
    %333 = vector.load %arg7[%c0_90, %c0_91] : memref<32x128xf32, #tpu.memory_space<vmem>>, vector<32x128xf32>
    %cst_92 = arith.constant dense<0.000000e+00> : vector<8x128xf32>
    %334 = tpu.matmul %332, %333, %cst_92 {dimension_numbers = #tpu.dot_dimension_numbers<[1], [0], [0], [1], [0, 0, 1, 1], [], []>} : vector<8x32xf32>, vector<32x128xf32>, vector<8x128xf32> -> vector<8x128xf32>
    %c0_93 = arith.constant 0 : index
    %c0_94 = arith.constant 0 : index
    %335 = vector.load %arg8[%c0_93, %c0_94] : memref<1x128xf32, #tpu.memory_space<vmem>>, vector<1x128xf32>
    %336 = vector.broadcast %335 : vector<1x128xf32> to vector<8x128xf32>
    %337 = arith.addf %334, %336 : vector<8x128xf32>
    %338 = arith.index_cast %c1_i32_78 : i32 to index
    %c0_95 = arith.constant 0 : index
    %c0_96 = arith.constant 0 : index
    %339 = vector.load %arg9[%338, %c0_95, %c0_96] : memref<8x8x128xf32, #tpu.memory_space<vmem>>, vector<1x8x128xf32>
    %340 = vector.shape_cast %339 : vector<1x8x128xf32> to vector<8x128xf32>
    %341 = vector.shape_cast %337 : vector<8x128xf32> to vector<1x8x128xf32>
    tpu.vector_store %arg9[%338, %c0_95, %c0_96], %341 {strides = array<i32>} : memref<8x8x128xf32, #tpu.memory_space<vmem>>, vector<1x8x128xf32>,
    %cst_97 = arith.constant dense<0xFF800000> : vector<8xf32>
    %342 = vector.multi_reduction <maximumf>, %337, %cst_97 [1] : vector<8x128xf32> to vector<8xf32>
    %343 = vector.shape_cast %342 : vector<8xf32> to vector<8x1xf32>
    %344 = vector.broadcast %343 : vector<8x1xf32> to vector<8x128xf32>
    %345 = arith.cmpf oeq, %337, %344 : vector<8x128xf32>
    %c128_i32 = arith.constant 128 : i32
    %346 = vector.broadcast %c128_i32 : i32 to vector<8x128xi32>
    %347 = arith.select %345, %255, %346 : vector<8x128xi1>, vector<8x128xi32>
    %cst_98 = arith.constant dense<2147483647> : vector<8xi32>
    %348 = vector.multi_reduction <minsi>, %347, %cst_98 [1] : vector<8x128xi32> to vector<8xi32>
    %349 = vector.shape_cast %348 : vector<8xi32> to vector<8x1xi32>
    %350 = vector.broadcast %349 : vector<8x1xi32> to vector<8x128xi32>
    %351 = arith.cmpi eq, %255, %350 : vector<8x128xi32>
    %352 = arith.extui %351 : vector<8x128xi1> to vector<8x128xi32>
    %353 = arith.sitofp %352 : vector<8x128xi32> to vector<8x128xf32>
    %c2_i32_99 = arith.constant 2 : i32
    %c0_100 = arith.constant 0 : index
    %c0_101 = arith.constant 0 : index
    %354 = vector.load %arg4[%c0_100, %c0_101] : memref<128x128xf32, #tpu.memory_space<vmem>>, vector<128x128xf32>
    %cst_102 = arith.constant dense<0.000000e+00> : vector<8x128xf32>
    %355 = tpu.matmul %353, %354, %cst_102 {dimension_numbers = #tpu.dot_dimension_numbers<[1], [0], [0], [1], [0, 0, 1, 1], [], []>} : vector<8x128xf32>, vector<128x128xf32>, vector<8x128xf32> -> vector<8x128xf32>
    %c0_103 = arith.constant 0 : index
    %c0_104 = arith.constant 0 : index
    %356 = vector.load %arg5[%c0_103, %c0_104] : memref<32x128xf32, #tpu.memory_space<vmem>>, vector<32x128xf32>
    %cst_105 = arith.constant dense<0.000000e+00> : vector<8x128xf32>
    %357 = tpu.matmul %332, %356, %cst_105 {dimension_numbers = #tpu.dot_dimension_numbers<[1], [0], [0], [1], [0, 0, 1, 1], [], []>} : vector<8x32xf32>, vector<32x128xf32>, vector<8x128xf32> -> vector<8x128xf32>
    %358 = arith.addf %355, %357 : vector<8x128xf32>
    %c0_106 = arith.constant 0 : index
    %c0_107 = arith.constant 0 : index
    %359 = vector.load %arg6[%c0_106, %c0_107] : memref<1x128xf32, #tpu.memory_space<vmem>>, vector<1x128xf32>
    %360 = vector.broadcast %359 : vector<1x128xf32> to vector<8x128xf32>
    %361 = arith.addf %358, %360 : vector<8x128xf32>
    %362 = vector.extract_strided_slice %361 {offsets = [0, 0], sizes = [8, 32], strides = [1, 1]} : vector<8x128xf32> to vector<8x32xf32>
    %363 = arith.negf %362 : vector<8x32xf32>
    %364 = math.exp %363 : vector<8x32xf32>
    %cst_108 = arith.constant 1.000000e+00 : f32
    %365 = vector.broadcast %cst_108 : f32 to vector<8x32xf32>
    %366 = arith.addf %365, %364 : vector<8x32xf32>
    %367 = arith.divf %365, %366 : vector<8x32xf32>
    %368 = vector.extract_strided_slice %361 {offsets = [0, 32], sizes = [8, 32], strides = [1, 1]} : vector<8x128xf32> to vector<8x32xf32>
    %369 = arith.negf %368 : vector<8x32xf32>
    %370 = math.exp %369 : vector<8x32xf32>
    %cst_109 = arith.constant 1.000000e+00 : f32
    %371 = vector.broadcast %cst_109 : f32 to vector<8x32xf32>
    %372 = arith.addf %371, %370 : vector<8x32xf32>
    %373 = arith.divf %371, %372 : vector<8x32xf32>
    %374 = vector.extract_strided_slice %361 {offsets = [0, 64], sizes = [8, 32], strides = [1, 1]} : vector<8x128xf32> to vector<8x32xf32>
    %375 = math.tanh %374 : vector<8x32xf32>
    %376 = vector.extract_strided_slice %361 {offsets = [0, 96], sizes = [8, 32], strides = [1, 1]} : vector<8x128xf32> to vector<8x32xf32>
    %377 = arith.negf %376 : vector<8x32xf32>
    %378 = math.exp %377 : vector<8x32xf32>
    %cst_110 = arith.constant 1.000000e+00 : f32
    %379 = vector.broadcast %cst_110 : f32 to vector<8x32xf32>
    %380 = arith.addf %379, %378 : vector<8x32xf32>
    %381 = arith.divf %379, %380 : vector<8x32xf32>
    %382 = arith.mulf %373, %330 : vector<8x32xf32>
    %383 = arith.mulf %367, %375 : vector<8x32xf32>
    %384 = arith.addf %382, %383 : vector<8x32xf32>
    %385 = math.tanh %384 : vector<8x32xf32>
    %386 = arith.mulf %381, %385 : vector<8x32xf32>
    %c0_111 = arith.constant 0 : index
    %c0_112 = arith.constant 0 : index
    %387 = vector.load %arg7[%c0_111, %c0_112] : memref<32x128xf32, #tpu.memory_space<vmem>>, vector<32x128xf32>
    %cst_113 = arith.constant dense<0.000000e+00> : vector<8x128xf32>
    %388 = tpu.matmul %386, %387, %cst_113 {dimension_numbers = #tpu.dot_dimension_numbers<[1], [0], [0], [1], [0, 0, 1, 1], [], []>} : vector<8x32xf32>, vector<32x128xf32>, vector<8x128xf32> -> vector<8x128xf32>
    %c0_114 = arith.constant 0 : index
    %c0_115 = arith.constant 0 : index
    %389 = vector.load %arg8[%c0_114, %c0_115] : memref<1x128xf32, #tpu.memory_space<vmem>>, vector<1x128xf32>
    %390 = vector.broadcast %389 : vector<1x128xf32> to vector<8x128xf32>
    %391 = arith.addf %388, %390 : vector<8x128xf32>
    %392 = arith.index_cast %c2_i32_99 : i32 to index
    %c0_116 = arith.constant 0 : index
    %c0_117 = arith.constant 0 : index
    %393 = vector.load %arg9[%392, %c0_116, %c0_117] : memref<8x8x128xf32, #tpu.memory_space<vmem>>, vector<1x8x128xf32>
    %394 = vector.shape_cast %393 : vector<1x8x128xf32> to vector<8x128xf32>
    %395 = vector.shape_cast %391 : vector<8x128xf32> to vector<1x8x128xf32>
    tpu.vector_store %arg9[%392, %c0_116, %c0_117], %395 {strides = array<i32>} : memref<8x8x128xf32, #tpu.memory_space<vmem>>, vector<1x8x128xf32>,
    %cst_118 = arith.constant dense<0xFF800000> : vector<8xf32>
    %396 = vector.multi_reduction <maximumf>, %391, %cst_118 [1] : vector<8x128xf32> to vector<8xf32>
    %397 = vector.shape_cast %396 : vector<8xf32> to vector<8x1xf32>
    %398 = vector.broadcast %397 : vector<8x1xf32> to vector<8x128xf32>
    %399 = arith.cmpf oeq, %391, %398 : vector<8x128xf32>
    %c128_i32_119 = arith.constant 128 : i32
    %400 = vector.broadcast %c128_i32_119 : i32 to vector<8x128xi32>
    %401 = arith.select %399, %255, %400 : vector<8x128xi1>, vector<8x128xi32>
    %cst_120 = arith.constant dense<2147483647> : vector<8xi32>
    %402 = vector.multi_reduction <minsi>, %401, %cst_120 [1] : vector<8x128xi32> to vector<8xi32>
    %403 = vector.shape_cast %402 : vector<8xi32> to vector<8x1xi32>
    %404 = vector.broadcast %403 : vector<8x1xi32> to vector<8x128xi32>
    %405 = arith.cmpi eq, %255, %404 : vector<8x128xi32>
    %406 = arith.extui %405 : vector<8x128xi1> to vector<8x128xi32>
    %407 = arith.sitofp %406 : vector<8x128xi32> to vector<8x128xf32>
    %c3_i32_121 = arith.constant 3 : i32
    %c0_122 = arith.constant 0 : index
    %c0_123 = arith.constant 0 : index
    %408 = vector.load %arg4[%c0_122, %c0_123] : memref<128x128xf32, #tpu.memory_space<vmem>>, vector<128x128xf32>
    %cst_124 = arith.constant dense<0.000000e+00> : vector<8x128xf32>
    %409 = tpu.matmul %407, %408, %cst_124 {dimension_numbers = #tpu.dot_dimension_numbers<[1], [0], [0], [1], [0, 0, 1, 1], [], []>} : vector<8x128xf32>, vector<128x128xf32>, vector<8x128xf32> -> vector<8x128xf32>
    %c0_125 = arith.constant 0 : index
    %c0_126 = arith.constant 0 : index
    %410 = vector.load %arg5[%c0_125, %c0_126] : memref<32x128xf32, #tpu.memory_space<vmem>>, vector<32x128xf32>
    %cst_127 = arith.constant dense<0.000000e+00> : vector<8x128xf32>
    %411 = tpu.matmul %386, %410, %cst_127 {dimension_numbers = #tpu.dot_dimension_numbers<[1], [0], [0], [1], [0, 0, 1, 1], [], []>} : vector<8x32xf32>, vector<32x128xf32>, vector<8x128xf32> -> vector<8x128xf32>
    %412 = arith.addf %409, %411 : vector<8x128xf32>
    %c0_128 = arith.constant 0 : index
    %c0_129 = arith.constant 0 : index
    %413 = vector.load %arg6[%c0_128, %c0_129] : memref<1x128xf32, #tpu.memory_space<vmem>>, vector<1x128xf32>
    %414 = vector.broadcast %413 : vector<1x128xf32> to vector<8x128xf32>
    %415 = arith.addf %412, %414 : vector<8x128xf32>
    %416 = vector.extract_strided_slice %415 {offsets = [0, 0], sizes = [8, 32], strides = [1, 1]} : vector<8x128xf32> to vector<8x32xf32>
    %417 = arith.negf %416 : vector<8x32xf32>
    %418 = math.exp %417 : vector<8x32xf32>
    %cst_130 = arith.constant 1.000000e+00 : f32
    %419 = vector.broadcast %cst_130 : f32 to vector<8x32xf32>
    %420 = arith.addf %419, %418 : vector<8x32xf32>
    %421 = arith.divf %419, %420 : vector<8x32xf32>
    %422 = vector.extract_strided_slice %415 {offsets = [0, 32], sizes = [8, 32], strides = [1, 1]} : vector<8x128xf32> to vector<8x32xf32>
    %423 = arith.negf %422 : vector<8x32xf32>
    %424 = math.exp %423 : vector<8x32xf32>
    %cst_131 = arith.constant 1.000000e+00 : f32
    %425 = vector.broadcast %cst_131 : f32 to vector<8x32xf32>
    %426 = arith.addf %425, %424 : vector<8x32xf32>
    %427 = arith.divf %425, %426 : vector<8x32xf32>
    %428 = vector.extract_strided_slice %415 {offsets = [0, 64], sizes = [8, 32], strides = [1, 1]} : vector<8x128xf32> to vector<8x32xf32>
    %429 = math.tanh %428 : vector<8x32xf32>
    %430 = vector.extract_strided_slice %415 {offsets = [0, 96], sizes = [8, 32], strides = [1, 1]} : vector<8x128xf32> to vector<8x32xf32>
    %431 = arith.negf %430 : vector<8x32xf32>
    %432 = math.exp %431 : vector<8x32xf32>
    %cst_132 = arith.constant 1.000000e+00 : f32
    %433 = vector.broadcast %cst_132 : f32 to vector<8x32xf32>
    %434 = arith.addf %433, %432 : vector<8x32xf32>
    %435 = arith.divf %433, %434 : vector<8x32xf32>
    %436 = arith.mulf %427, %384 : vector<8x32xf32>
    %437 = arith.mulf %421, %429 : vector<8x32xf32>
    %438 = arith.addf %436, %437 : vector<8x32xf32>
    %439 = math.tanh %438 : vector<8x32xf32>
    %440 = arith.mulf %435, %439 : vector<8x32xf32>
    %c0_133 = arith.constant 0 : index
    %c0_134 = arith.constant 0 : index
    %441 = vector.load %arg7[%c0_133, %c0_134] : memref<32x128xf32, #tpu.memory_space<vmem>>, vector<32x128xf32>
    %cst_135 = arith.constant dense<0.000000e+00> : vector<8x128xf32>
    %442 = tpu.matmul %440, %441, %cst_135 {dimension_numbers = #tpu.dot_dimension_numbers<[1], [0], [0], [1], [0, 0, 1, 1], [], []>} : vector<8x32xf32>, vector<32x128xf32>, vector<8x128xf32> -> vector<8x128xf32>
    %c0_136 = arith.constant 0 : index
    %c0_137 = arith.constant 0 : index
    %443 = vector.load %arg8[%c0_136, %c0_137] : memref<1x128xf32, #tpu.memory_space<vmem>>, vector<1x128xf32>
    %444 = vector.broadcast %443 : vector<1x128xf32> to vector<8x128xf32>
    %445 = arith.addf %442, %444 : vector<8x128xf32>
    %446 = arith.index_cast %c3_i32_121 : i32 to index
    %c0_138 = arith.constant 0 : index
    %c0_139 = arith.constant 0 : index
    %447 = vector.load %arg9[%446, %c0_138, %c0_139] : memref<8x8x128xf32, #tpu.memory_space<vmem>>, vector<1x8x128xf32>
    %448 = vector.shape_cast %447 : vector<1x8x128xf32> to vector<8x128xf32>
    %449 = vector.shape_cast %445 : vector<8x128xf32> to vector<1x8x128xf32>
    tpu.vector_store %arg9[%446, %c0_138, %c0_139], %449 {strides = array<i32>} : memref<8x8x128xf32, #tpu.memory_space<vmem>>, vector<1x8x128xf32>,
    %cst_140 = arith.constant dense<0xFF800000> : vector<8xf32>
    %450 = vector.multi_reduction <maximumf>, %445, %cst_140 [1] : vector<8x128xf32> to vector<8xf32>
    %451 = vector.shape_cast %450 : vector<8xf32> to vector<8x1xf32>
    %452 = vector.broadcast %451 : vector<8x1xf32> to vector<8x128xf32>
    %453 = arith.cmpf oeq, %445, %452 : vector<8x128xf32>
    %c128_i32_141 = arith.constant 128 : i32
    %454 = vector.broadcast %c128_i32_141 : i32 to vector<8x128xi32>
    %455 = arith.select %453, %255, %454 : vector<8x128xi1>, vector<8x128xi32>
    %cst_142 = arith.constant dense<2147483647> : vector<8xi32>
    %456 = vector.multi_reduction <minsi>, %455, %cst_142 [1] : vector<8x128xi32> to vector<8xi32>
    %457 = vector.shape_cast %456 : vector<8xi32> to vector<8x1xi32>
    %458 = vector.broadcast %457 : vector<8x1xi32> to vector<8x128xi32>
    %459 = arith.cmpi eq, %255, %458 : vector<8x128xi32>
    %460 = arith.extui %459 : vector<8x128xi1> to vector<8x128xi32>
    %461 = arith.sitofp %460 : vector<8x128xi32> to vector<8x128xf32>
    %c4_i32_143 = arith.constant 4 : i32
    %c0_144 = arith.constant 0 : index
    %c0_145 = arith.constant 0 : index
    %462 = vector.load %arg4[%c0_144, %c0_145] : memref<128x128xf32, #tpu.memory_space<vmem>>, vector<128x128xf32>
    %cst_146 = arith.constant dense<0.000000e+00> : vector<8x128xf32>
    %463 = tpu.matmul %461, %462, %cst_146 {dimension_numbers = #tpu.dot_dimension_numbers<[1], [0], [0], [1], [0, 0, 1, 1], [], []>} : vector<8x128xf32>, vector<128x128xf32>, vector<8x128xf32> -> vector<8x128xf32>
    %c0_147 = arith.constant 0 : index
    %c0_148 = arith.constant 0 : index
    %464 = vector.load %arg5[%c0_147, %c0_148] : memref<32x128xf32, #tpu.memory_space<vmem>>, vector<32x128xf32>
    %cst_149 = arith.constant dense<0.000000e+00> : vector<8x128xf32>
    %465 = tpu.matmul %440, %464, %cst_149 {dimension_numbers = #tpu.dot_dimension_numbers<[1], [0], [0], [1], [0, 0, 1, 1], [], []>} : vector<8x32xf32>, vector<32x128xf32>, vector<8x128xf32> -> vector<8x128xf32>
    %466 = arith.addf %463, %465 : vector<8x128xf32>
    %c0_150 = arith.constant 0 : index
    %c0_151 = arith.constant 0 : index
    %467 = vector.load %arg6[%c0_150, %c0_151] : memref<1x128xf32, #tpu.memory_space<vmem>>, vector<1x128xf32>
    %468 = vector.broadcast %467 : vector<1x128xf32> to vector<8x128xf32>
    %469 = arith.addf %466, %468 : vector<8x128xf32>
    %470 = vector.extract_strided_slice %469 {offsets = [0, 0], sizes = [8, 32], strides = [1, 1]} : vector<8x128xf32> to vector<8x32xf32>
    %471 = arith.negf %470 : vector<8x32xf32>
    %472 = math.exp %471 : vector<8x32xf32>
    %cst_152 = arith.constant 1.000000e+00 : f32
    %473 = vector.broadcast %cst_152 : f32 to vector<8x32xf32>
    %474 = arith.addf %473, %472 : vector<8x32xf32>
    %475 = arith.divf %473, %474 : vector<8x32xf32>
    %476 = vector.extract_strided_slice %469 {offsets = [0, 32], sizes = [8, 32], strides = [1, 1]} : vector<8x128xf32> to vector<8x32xf32>
    %477 = arith.negf %476 : vector<8x32xf32>
    %478 = math.exp %477 : vector<8x32xf32>
    %cst_153 = arith.constant 1.000000e+00 : f32
    %479 = vector.broadcast %cst_153 : f32 to vector<8x32xf32>
    %480 = arith.addf %479, %478 : vector<8x32xf32>
    %481 = arith.divf %479, %480 : vector<8x32xf32>
    %482 = vector.extract_strided_slice %469 {offsets = [0, 64], sizes = [8, 32], strides = [1, 1]} : vector<8x128xf32> to vector<8x32xf32>
    %483 = math.tanh %482 : vector<8x32xf32>
    %484 = vector.extract_strided_slice %469 {offsets = [0, 96], sizes = [8, 32], strides = [1, 1]} : vector<8x128xf32> to vector<8x32xf32>
    %485 = arith.negf %484 : vector<8x32xf32>
    %486 = math.exp %485 : vector<8x32xf32>
    %cst_154 = arith.constant 1.000000e+00 : f32
    %487 = vector.broadcast %cst_154 : f32 to vector<8x32xf32>
    %488 = arith.addf %487, %486 : vector<8x32xf32>
    %489 = arith.divf %487, %488 : vector<8x32xf32>
    %490 = arith.mulf %481, %438 : vector<8x32xf32>
    %491 = arith.mulf %475, %483 : vector<8x32xf32>
    %492 = arith.addf %490, %491 : vector<8x32xf32>
    %493 = math.tanh %492 : vector<8x32xf32>
    %494 = arith.mulf %489, %493 : vector<8x32xf32>
    %c0_155 = arith.constant 0 : index
    %c0_156 = arith.constant 0 : index
    %495 = vector.load %arg7[%c0_155, %c0_156] : memref<32x128xf32, #tpu.memory_space<vmem>>, vector<32x128xf32>
    %cst_157 = arith.constant dense<0.000000e+00> : vector<8x128xf32>
    %496 = tpu.matmul %494, %495, %cst_157 {dimension_numbers = #tpu.dot_dimension_numbers<[1], [0], [0], [1], [0, 0, 1, 1], [], []>} : vector<8x32xf32>, vector<32x128xf32>, vector<8x128xf32> -> vector<8x128xf32>
    %c0_158 = arith.constant 0 : index
    %c0_159 = arith.constant 0 : index
    %497 = vector.load %arg8[%c0_158, %c0_159] : memref<1x128xf32, #tpu.memory_space<vmem>>, vector<1x128xf32>
    %498 = vector.broadcast %497 : vector<1x128xf32> to vector<8x128xf32>
    %499 = arith.addf %496, %498 : vector<8x128xf32>
    %500 = arith.index_cast %c4_i32_143 : i32 to index
    %c0_160 = arith.constant 0 : index
    %c0_161 = arith.constant 0 : index
    %501 = vector.load %arg9[%500, %c0_160, %c0_161] : memref<8x8x128xf32, #tpu.memory_space<vmem>>, vector<1x8x128xf32>
    %502 = vector.shape_cast %501 : vector<1x8x128xf32> to vector<8x128xf32>
    %503 = vector.shape_cast %499 : vector<8x128xf32> to vector<1x8x128xf32>
    tpu.vector_store %arg9[%500, %c0_160, %c0_161], %503 {strides = array<i32>} : memref<8x8x128xf32, #tpu.memory_space<vmem>>, vector<1x8x128xf32>,
    %cst_162 = arith.constant dense<0xFF800000> : vector<8xf32>
    %504 = vector.multi_reduction <maximumf>, %499, %cst_162 [1] : vector<8x128xf32> to vector<8xf32>
    %505 = vector.shape_cast %504 : vector<8xf32> to vector<8x1xf32>
    %506 = vector.broadcast %505 : vector<8x1xf32> to vector<8x128xf32>
    %507 = arith.cmpf oeq, %499, %506 : vector<8x128xf32>
    %c128_i32_163 = arith.constant 128 : i32
    %508 = vector.broadcast %c128_i32_163 : i32 to vector<8x128xi32>
    %509 = arith.select %507, %255, %508 : vector<8x128xi1>, vector<8x128xi32>
    %cst_164 = arith.constant dense<2147483647> : vector<8xi32>
    %510 = vector.multi_reduction <minsi>, %509, %cst_164 [1] : vector<8x128xi32> to vector<8xi32>
    %511 = vector.shape_cast %510 : vector<8xi32> to vector<8x1xi32>
    %512 = vector.broadcast %511 : vector<8x1xi32> to vector<8x128xi32>
    %513 = arith.cmpi eq, %255, %512 : vector<8x128xi32>
    %514 = arith.extui %513 : vector<8x128xi1> to vector<8x128xi32>
    %515 = arith.sitofp %514 : vector<8x128xi32> to vector<8x128xf32>
    %c5_i32_165 = arith.constant 5 : i32
    %c0_166 = arith.constant 0 : index
    %c0_167 = arith.constant 0 : index
    %516 = vector.load %arg4[%c0_166, %c0_167] : memref<128x128xf32, #tpu.memory_space<vmem>>, vector<128x128xf32>
    %cst_168 = arith.constant dense<0.000000e+00> : vector<8x128xf32>
    %517 = tpu.matmul %515, %516, %cst_168 {dimension_numbers = #tpu.dot_dimension_numbers<[1], [0], [0], [1], [0, 0, 1, 1], [], []>} : vector<8x128xf32>, vector<128x128xf32>, vector<8x128xf32> -> vector<8x128xf32>
    %c0_169 = arith.constant 0 : index
    %c0_170 = arith.constant 0 : index
    %518 = vector.load %arg5[%c0_169, %c0_170] : memref<32x128xf32, #tpu.memory_space<vmem>>, vector<32x128xf32>
    %cst_171 = arith.constant dense<0.000000e+00> : vector<8x128xf32>
    %519 = tpu.matmul %494, %518, %cst_171 {dimension_numbers = #tpu.dot_dimension_numbers<[1], [0], [0], [1], [0, 0, 1, 1], [], []>} : vector<8x32xf32>, vector<32x128xf32>, vector<8x128xf32> -> vector<8x128xf32>
    %520 = arith.addf %517, %519 : vector<8x128xf32>
    %c0_172 = arith.constant 0 : index
    %c0_173 = arith.constant 0 : index
    %521 = vector.load %arg6[%c0_172, %c0_173] : memref<1x128xf32, #tpu.memory_space<vmem>>, vector<1x128xf32>
    %522 = vector.broadcast %521 : vector<1x128xf32> to vector<8x128xf32>
    %523 = arith.addf %520, %522 : vector<8x128xf32>
    %524 = vector.extract_strided_slice %523 {offsets = [0, 0], sizes = [8, 32], strides = [1, 1]} : vector<8x128xf32> to vector<8x32xf32>
    %525 = arith.negf %524 : vector<8x32xf32>
    %526 = math.exp %525 : vector<8x32xf32>
    %cst_174 = arith.constant 1.000000e+00 : f32
    %527 = vector.broadcast %cst_174 : f32 to vector<8x32xf32>
    %528 = arith.addf %527, %526 : vector<8x32xf32>
    %529 = arith.divf %527, %528 : vector<8x32xf32>
    %530 = vector.extract_strided_slice %523 {offsets = [0, 32], sizes = [8, 32], strides = [1, 1]} : vector<8x128xf32> to vector<8x32xf32>
    %531 = arith.negf %530 : vector<8x32xf32>
    %532 = math.exp %531 : vector<8x32xf32>
    %cst_175 = arith.constant 1.000000e+00 : f32
    %533 = vector.broadcast %cst_175 : f32 to vector<8x32xf32>
    %534 = arith.addf %533, %532 : vector<8x32xf32>
    %535 = arith.divf %533, %534 : vector<8x32xf32>
    %536 = vector.extract_strided_slice %523 {offsets = [0, 64], sizes = [8, 32], strides = [1, 1]} : vector<8x128xf32> to vector<8x32xf32>
    %537 = math.tanh %536 : vector<8x32xf32>
    %538 = vector.extract_strided_slice %523 {offsets = [0, 96], sizes = [8, 32], strides = [1, 1]} : vector<8x128xf32> to vector<8x32xf32>
    %539 = arith.negf %538 : vector<8x32xf32>
    %540 = math.exp %539 : vector<8x32xf32>
    %cst_176 = arith.constant 1.000000e+00 : f32
    %541 = vector.broadcast %cst_176 : f32 to vector<8x32xf32>
    %542 = arith.addf %541, %540 : vector<8x32xf32>
    %543 = arith.divf %541, %542 : vector<8x32xf32>
    %544 = arith.mulf %535, %492 : vector<8x32xf32>
    %545 = arith.mulf %529, %537 : vector<8x32xf32>
    %546 = arith.addf %544, %545 : vector<8x32xf32>
    %547 = math.tanh %546 : vector<8x32xf32>
    %548 = arith.mulf %543, %547 : vector<8x32xf32>
    %c0_177 = arith.constant 0 : index
    %c0_178 = arith.constant 0 : index
    %549 = vector.load %arg7[%c0_177, %c0_178] : memref<32x128xf32, #tpu.memory_space<vmem>>, vector<32x128xf32>
    %cst_179 = arith.constant dense<0.000000e+00> : vector<8x128xf32>
    %550 = tpu.matmul %548, %549, %cst_179 {dimension_numbers = #tpu.dot_dimension_numbers<[1], [0], [0], [1], [0, 0, 1, 1], [], []>} : vector<8x32xf32>, vector<32x128xf32>, vector<8x128xf32> -> vector<8x128xf32>
    %c0_180 = arith.constant 0 : index
    %c0_181 = arith.constant 0 : index
    %551 = vector.load %arg8[%c0_180, %c0_181] : memref<1x128xf32, #tpu.memory_space<vmem>>, vector<1x128xf32>
    %552 = vector.broadcast %551 : vector<1x128xf32> to vector<8x128xf32>
    %553 = arith.addf %550, %552 : vector<8x128xf32>
    %554 = arith.index_cast %c5_i32_165 : i32 to index
    %c0_182 = arith.constant 0 : index
    %c0_183 = arith.constant 0 : index
    %555 = vector.load %arg9[%554, %c0_182, %c0_183] : memref<8x8x128xf32, #tpu.memory_space<vmem>>, vector<1x8x128xf32>
    %556 = vector.shape_cast %555 : vector<1x8x128xf32> to vector<8x128xf32>
    %557 = vector.shape_cast %553 : vector<8x128xf32> to vector<1x8x128xf32>
    tpu.vector_store %arg9[%554, %c0_182, %c0_183], %557 {strides = array<i32>} : memref<8x8x128xf32, #tpu.memory_space<vmem>>, vector<1x8x128xf32>,
    %cst_184 = arith.constant dense<0xFF800000> : vector<8xf32>
    %558 = vector.multi_reduction <maximumf>, %553, %cst_184 [1] : vector<8x128xf32> to vector<8xf32>
    %559 = vector.shape_cast %558 : vector<8xf32> to vector<8x1xf32>
    %560 = vector.broadcast %559 : vector<8x1xf32> to vector<8x128xf32>
    %561 = arith.cmpf oeq, %553, %560 : vector<8x128xf32>
    %c128_i32_185 = arith.constant 128 : i32
    %562 = vector.broadcast %c128_i32_185 : i32 to vector<8x128xi32>
    %563 = arith.select %561, %255, %562 : vector<8x128xi1>, vector<8x128xi32>
    %cst_186 = arith.constant dense<2147483647> : vector<8xi32>
    %564 = vector.multi_reduction <minsi>, %563, %cst_186 [1] : vector<8x128xi32> to vector<8xi32>
    %565 = vector.shape_cast %564 : vector<8xi32> to vector<8x1xi32>
    %566 = vector.broadcast %565 : vector<8x1xi32> to vector<8x128xi32>
    %567 = arith.cmpi eq, %255, %566 : vector<8x128xi32>
    %568 = arith.extui %567 : vector<8x128xi1> to vector<8x128xi32>
    %569 = arith.sitofp %568 : vector<8x128xi32> to vector<8x128xf32>
    %c6_i32_187 = arith.constant 6 : i32
    %c0_188 = arith.constant 0 : index
    %c0_189 = arith.constant 0 : index
    %570 = vector.load %arg4[%c0_188, %c0_189] : memref<128x128xf32, #tpu.memory_space<vmem>>, vector<128x128xf32>
    %cst_190 = arith.constant dense<0.000000e+00> : vector<8x128xf32>
    %571 = tpu.matmul %569, %570, %cst_190 {dimension_numbers = #tpu.dot_dimension_numbers<[1], [0], [0], [1], [0, 0, 1, 1], [], []>} : vector<8x128xf32>, vector<128x128xf32>, vector<8x128xf32> -> vector<8x128xf32>
    %c0_191 = arith.constant 0 : index
    %c0_192 = arith.constant 0 : index
    %572 = vector.load %arg5[%c0_191, %c0_192] : memref<32x128xf32, #tpu.memory_space<vmem>>, vector<32x128xf32>
    %cst_193 = arith.constant dense<0.000000e+00> : vector<8x128xf32>
    %573 = tpu.matmul %548, %572, %cst_193 {dimension_numbers = #tpu.dot_dimension_numbers<[1], [0], [0], [1], [0, 0, 1, 1], [], []>} : vector<8x32xf32>, vector<32x128xf32>, vector<8x128xf32> -> vector<8x128xf32>
    %574 = arith.addf %571, %573 : vector<8x128xf32>
    %c0_194 = arith.constant 0 : index
    %c0_195 = arith.constant 0 : index
    %575 = vector.load %arg6[%c0_194, %c0_195] : memref<1x128xf32, #tpu.memory_space<vmem>>, vector<1x128xf32>
    %576 = vector.broadcast %575 : vector<1x128xf32> to vector<8x128xf32>
    %577 = arith.addf %574, %576 : vector<8x128xf32>
    %578 = vector.extract_strided_slice %577 {offsets = [0, 0], sizes = [8, 32], strides = [1, 1]} : vector<8x128xf32> to vector<8x32xf32>
    %579 = arith.negf %578 : vector<8x32xf32>
    %580 = math.exp %579 : vector<8x32xf32>
    %cst_196 = arith.constant 1.000000e+00 : f32
    %581 = vector.broadcast %cst_196 : f32 to vector<8x32xf32>
    %582 = arith.addf %581, %580 : vector<8x32xf32>
    %583 = arith.divf %581, %582 : vector<8x32xf32>
    %584 = vector.extract_strided_slice %577 {offsets = [0, 32], sizes = [8, 32], strides = [1, 1]} : vector<8x128xf32> to vector<8x32xf32>
    %585 = arith.negf %584 : vector<8x32xf32>
    %586 = math.exp %585 : vector<8x32xf32>
    %cst_197 = arith.constant 1.000000e+00 : f32
    %587 = vector.broadcast %cst_197 : f32 to vector<8x32xf32>
    %588 = arith.addf %587, %586 : vector<8x32xf32>
    %589 = arith.divf %587, %588 : vector<8x32xf32>
    %590 = vector.extract_strided_slice %577 {offsets = [0, 64], sizes = [8, 32], strides = [1, 1]} : vector<8x128xf32> to vector<8x32xf32>
    %591 = math.tanh %590 : vector<8x32xf32>
    %592 = vector.extract_strided_slice %577 {offsets = [0, 96], sizes = [8, 32], strides = [1, 1]} : vector<8x128xf32> to vector<8x32xf32>
    %593 = arith.negf %592 : vector<8x32xf32>
    %594 = math.exp %593 : vector<8x32xf32>
    %cst_198 = arith.constant 1.000000e+00 : f32
    %595 = vector.broadcast %cst_198 : f32 to vector<8x32xf32>
    %596 = arith.addf %595, %594 : vector<8x32xf32>
    %597 = arith.divf %595, %596 : vector<8x32xf32>
    %598 = arith.mulf %589, %546 : vector<8x32xf32>
    %599 = arith.mulf %583, %591 : vector<8x32xf32>
    %600 = arith.addf %598, %599 : vector<8x32xf32>
    %601 = math.tanh %600 : vector<8x32xf32>
    %602 = arith.mulf %597, %601 : vector<8x32xf32>
    %c0_199 = arith.constant 0 : index
    %c0_200 = arith.constant 0 : index
    %603 = vector.load %arg7[%c0_199, %c0_200] : memref<32x128xf32, #tpu.memory_space<vmem>>, vector<32x128xf32>
    %cst_201 = arith.constant dense<0.000000e+00> : vector<8x128xf32>
    %604 = tpu.matmul %602, %603, %cst_201 {dimension_numbers = #tpu.dot_dimension_numbers<[1], [0], [0], [1], [0, 0, 1, 1], [], []>} : vector<8x32xf32>, vector<32x128xf32>, vector<8x128xf32> -> vector<8x128xf32>
    %c0_202 = arith.constant 0 : index
    %c0_203 = arith.constant 0 : index
    %605 = vector.load %arg8[%c0_202, %c0_203] : memref<1x128xf32, #tpu.memory_space<vmem>>, vector<1x128xf32>
    %606 = vector.broadcast %605 : vector<1x128xf32> to vector<8x128xf32>
    %607 = arith.addf %604, %606 : vector<8x128xf32>
    %608 = arith.index_cast %c6_i32_187 : i32 to index
    %c0_204 = arith.constant 0 : index
    %c0_205 = arith.constant 0 : index
    %609 = vector.load %arg9[%608, %c0_204, %c0_205] : memref<8x8x128xf32, #tpu.memory_space<vmem>>, vector<1x8x128xf32>
    %610 = vector.shape_cast %609 : vector<1x8x128xf32> to vector<8x128xf32>
    %611 = vector.shape_cast %607 : vector<8x128xf32> to vector<1x8x128xf32>
    tpu.vector_store %arg9[%608, %c0_204, %c0_205], %611 {strides = array<i32>} : memref<8x8x128xf32, #tpu.memory_space<vmem>>, vector<1x8x128xf32>,
    %cst_206 = arith.constant dense<0xFF800000> : vector<8xf32>
    %612 = vector.multi_reduction <maximumf>, %607, %cst_206 [1] : vector<8x128xf32> to vector<8xf32>
    %613 = vector.shape_cast %612 : vector<8xf32> to vector<8x1xf32>
    %614 = vector.broadcast %613 : vector<8x1xf32> to vector<8x128xf32>
    %615 = arith.cmpf oeq, %607, %614 : vector<8x128xf32>
    %c128_i32_207 = arith.constant 128 : i32
    %616 = vector.broadcast %c128_i32_207 : i32 to vector<8x128xi32>
    %617 = arith.select %615, %255, %616 : vector<8x128xi1>, vector<8x128xi32>
    %cst_208 = arith.constant dense<2147483647> : vector<8xi32>
    %618 = vector.multi_reduction <minsi>, %617, %cst_208 [1] : vector<8x128xi32> to vector<8xi32>
    %619 = vector.shape_cast %618 : vector<8xi32> to vector<8x1xi32>
    %620 = vector.broadcast %619 : vector<8x1xi32> to vector<8x128xi32>
    %621 = arith.cmpi eq, %255, %620 : vector<8x128xi32>
    %622 = arith.extui %621 : vector<8x128xi1> to vector<8x128xi32>
    %623 = arith.sitofp %622 : vector<8x128xi32> to vector<8x128xf32>
    %c7_i32_209 = arith.constant 7 : i32
    %c0_210 = arith.constant 0 : index
    %c0_211 = arith.constant 0 : index
    %624 = vector.load %arg4[%c0_210, %c0_211] : memref<128x128xf32, #tpu.memory_space<vmem>>, vector<128x128xf32>
    %cst_212 = arith.constant dense<0.000000e+00> : vector<8x128xf32>
    %625 = tpu.matmul %623, %624, %cst_212 {dimension_numbers = #tpu.dot_dimension_numbers<[1], [0], [0], [1], [0, 0, 1, 1], [], []>} : vector<8x128xf32>, vector<128x128xf32>, vector<8x128xf32> -> vector<8x128xf32>
    %c0_213 = arith.constant 0 : index
    %c0_214 = arith.constant 0 : index
    %626 = vector.load %arg5[%c0_213, %c0_214] : memref<32x128xf32, #tpu.memory_space<vmem>>, vector<32x128xf32>
    %cst_215 = arith.constant dense<0.000000e+00> : vector<8x128xf32>
    %627 = tpu.matmul %602, %626, %cst_215 {dimension_numbers = #tpu.dot_dimension_numbers<[1], [0], [0], [1], [0, 0, 1, 1], [], []>} : vector<8x32xf32>, vector<32x128xf32>, vector<8x128xf32> -> vector<8x128xf32>
    %628 = arith.addf %625, %627 : vector<8x128xf32>
    %c0_216 = arith.constant 0 : index
    %c0_217 = arith.constant 0 : index
    %629 = vector.load %arg6[%c0_216, %c0_217] : memref<1x128xf32, #tpu.memory_space<vmem>>, vector<1x128xf32>
    %630 = vector.broadcast %629 : vector<1x128xf32> to vector<8x128xf32>
    %631 = arith.addf %628, %630 : vector<8x128xf32>
    %632 = vector.extract_strided_slice %631 {offsets = [0, 0], sizes = [8, 32], strides = [1, 1]} : vector<8x128xf32> to vector<8x32xf32>
    %633 = arith.negf %632 : vector<8x32xf32>
    %634 = math.exp %633 : vector<8x32xf32>
    %cst_218 = arith.constant 1.000000e+00 : f32
    %635 = vector.broadcast %cst_218 : f32 to vector<8x32xf32>
    %636 = arith.addf %635, %634 : vector<8x32xf32>
    %637 = arith.divf %635, %636 : vector<8x32xf32>
    %638 = vector.extract_strided_slice %631 {offsets = [0, 32], sizes = [8, 32], strides = [1, 1]} : vector<8x128xf32> to vector<8x32xf32>
    %639 = arith.negf %638 : vector<8x32xf32>
    %640 = math.exp %639 : vector<8x32xf32>
    %cst_219 = arith.constant 1.000000e+00 : f32
    %641 = vector.broadcast %cst_219 : f32 to vector<8x32xf32>
    %642 = arith.addf %641, %640 : vector<8x32xf32>
    %643 = arith.divf %641, %642 : vector<8x32xf32>
    %644 = vector.extract_strided_slice %631 {offsets = [0, 64], sizes = [8, 32], strides = [1, 1]} : vector<8x128xf32> to vector<8x32xf32>
    %645 = math.tanh %644 : vector<8x32xf32>
    %646 = vector.extract_strided_slice %631 {offsets = [0, 96], sizes = [8, 32], strides = [1, 1]} : vector<8x128xf32> to vector<8x32xf32>
    %647 = arith.negf %646 : vector<8x32xf32>
    %648 = math.exp %647 : vector<8x32xf32>
    %cst_220 = arith.constant 1.000000e+00 : f32
    %649 = vector.broadcast %cst_220 : f32 to vector<8x32xf32>
    %650 = arith.addf %649, %648 : vector<8x32xf32>
    %651 = arith.divf %649, %650 : vector<8x32xf32>
    %652 = arith.mulf %643, %600 : vector<8x32xf32>
    %653 = arith.mulf %637, %645 : vector<8x32xf32>
    %654 = arith.addf %652, %653 : vector<8x32xf32>
    %655 = math.tanh %654 : vector<8x32xf32>
    %656 = arith.mulf %651, %655 : vector<8x32xf32>
    %c0_221 = arith.constant 0 : index
    %c0_222 = arith.constant 0 : index
    %657 = vector.load %arg7[%c0_221, %c0_222] : memref<32x128xf32, #tpu.memory_space<vmem>>, vector<32x128xf32>
    %cst_223 = arith.constant dense<0.000000e+00> : vector<8x128xf32>
    %658 = tpu.matmul %656, %657, %cst_223 {dimension_numbers = #tpu.dot_dimension_numbers<[1], [0], [0], [1], [0, 0, 1, 1], [], []>} : vector<8x32xf32>, vector<32x128xf32>, vector<8x128xf32> -> vector<8x128xf32>
    %c0_224 = arith.constant 0 : index
    %c0_225 = arith.constant 0 : index
    %659 = vector.load %arg8[%c0_224, %c0_225] : memref<1x128xf32, #tpu.memory_space<vmem>>, vector<1x128xf32>
    %660 = vector.broadcast %659 : vector<1x128xf32> to vector<8x128xf32>
    %661 = arith.addf %658, %660 : vector<8x128xf32>
    %662 = arith.index_cast %c7_i32_209 : i32 to index
    %c0_226 = arith.constant 0 : index
    %c0_227 = arith.constant 0 : index
    %663 = vector.load %arg9[%662, %c0_226, %c0_227] : memref<8x8x128xf32, #tpu.memory_space<vmem>>, vector<1x8x128xf32>
    %664 = vector.shape_cast %663 : vector<1x8x128xf32> to vector<8x128xf32>
    %665 = vector.shape_cast %661 : vector<8x128xf32> to vector<1x8x128xf32>
    tpu.vector_store %arg9[%662, %c0_226, %c0_227], %665 {strides = array<i32>} : memref<8x8x128xf32, #tpu.memory_space<vmem>>, vector<1x8x128xf32>,
    %cst_228 = arith.constant dense<0xFF800000> : vector<8xf32>
    %666 = vector.multi_reduction <maximumf>, %661, %cst_228 [1] : vector<8x128xf32> to vector<8xf32>
    %667 = vector.shape_cast %666 : vector<8xf32> to vector<8x1xf32>
    %668 = vector.broadcast %667 : vector<8x1xf32> to vector<8x128xf32>
    %669 = arith.cmpf oeq, %661, %668 : vector<8x128xf32>
    %c128_i32_229 = arith.constant 128 : i32
    %670 = vector.broadcast %c128_i32_229 : i32 to vector<8x128xi32>
    %671 = arith.select %669, %255, %670 : vector<8x128xi1>, vector<8x128xi32>
    %cst_230 = arith.constant dense<2147483647> : vector<8xi32>
    %672 = vector.multi_reduction <minsi>, %671, %cst_230 [1] : vector<8x128xi32> to vector<8xi32>
    %673 = vector.shape_cast %672 : vector<8xi32> to vector<8x1xi32>
    %674 = vector.broadcast %673 : vector<8x1xi32> to vector<8x128xi32>
    %675 = arith.cmpi eq, %255, %674 : vector<8x128xi32>
    %676 = arith.extui %675 : vector<8x128xi1> to vector<8x128xi32>
    %677 = arith.sitofp %676 : vector<8x128xi32> to vector<8x128xf32>
    %c7_i32_231 = arith.constant 7 : i32
    return
  }
  func.func @transform_0(%arg0: i32, %arg1: memref<8xi32, #tpu.memory_space<smem>>) -> (i32, i32, i32) {
    %c0_i32 = arith.constant 0 : i32
    %c0_i32_0 = arith.constant 0 : i32
    %c0_i32_1 = arith.constant 0 : i32
    %c0_i32_2 = arith.constant 0 : i32
    return %c0_i32, %c0_i32_0, %c0_i32_1 : i32, i32, i32
  }
  func.func @transform_1(%arg0: i32, %arg1: memref<8xi32, #tpu.memory_space<smem>>) -> (i32, i32) {
    %c0_i32 = arith.constant 0 : i32
    %c0_i32_0 = arith.constant 0 : i32
    %c0_i32_1 = arith.constant 0 : i32
    return %c0_i32, %c0_i32_0 : i32, i32
  }
  func.func @transform_2(%arg0: i32, %arg1: memref<8xi32, #tpu.memory_space<smem>>) -> (i32, i32) {
    %c0_i32 = arith.constant 0 : i32
    %c0_i32_0 = arith.constant 0 : i32
    %c0_i32_1 = arith.constant 0 : i32
    return %c0_i32, %c0_i32_0 : i32, i32
  }
  func.func @transform_3(%arg0: i32, %arg1: memref<8xi32, #tpu.memory_space<smem>>) -> (i32, i32) {
    %c0_i32 = arith.constant 0 : i32
    %c0_i32_0 = arith.constant 0 : i32
    %c0_i32_1 = arith.constant 0 : i32
    return %c0_i32, %c0_i32_0 : i32, i32
  }
  func.func @transform_4(%arg0: i32, %arg1: memref<8xi32, #tpu.memory_space<smem>>) -> (i32, i32) {
    %c0_i32 = arith.constant 0 : i32
    %c0_i32_0 = arith.constant 0 : i32
    %c0_i32_1 = arith.constant 0 : i32
    return %c0_i32, %c0_i32_0 : i32, i32
  }
  func.func @transform_5(%arg0: i32, %arg1: memref<8xi32, #tpu.memory_space<smem>>) -> (i32, i32) {
    %c0_i32 = arith.constant 0 : i32
    %c0_i32_0 = arith.constant 0 : i32
    %c0_i32_1 = arith.constant 0 : i32
    return %c0_i32, %c0_i32_0 : i32, i32
  }
  func.func @transform_6(%arg0: i32, %arg1: memref<8xi32, #tpu.memory_space<smem>>) -> (i32, i32) {
    %c0_i32 = arith.constant 0 : i32
    %c0_i32_0 = arith.constant 0 : i32
    %c0_i32_1 = arith.constant 0 : i32
    return %c0_i32, %c0_i32_0 : i32, i32
  }
  func.func @transform_7(%arg0: i32, %arg1: memref<8xi32, #tpu.memory_space<smem>>) -> (i32, i32, i32) {
    %c0_i32 = arith.constant 0 : i32
    %c0_i32_0 = arith.constant 0 : i32
    %c0_i32_1 = arith.constant 0 : i32
    %c0_i32_2 = arith.constant 0 : i32
    return %c0_i32, %c0_i32_0, %c0_i32_1 : i32, i32, i32
  }
}

</mosaic_0001>

<llo_original>
// kernel: seq2seq_forward.1
$region0: #{seq2seq_forward.1}
  #allocation0 [shape = 'u32[]', space=smem, size = 0x4, offset = 0x4, fixed_abs, tag = 'smem constant byte address 0x4 - core index']
  #allocation1 [shape = 'u32[72,128]{1,0:T(1,128)}', space=vmem, size = 0x9000, scoped, tag = 'internal scratch']
  #allocation2 [shape = 's32[1]{0}', space=sflag, size = 0x4, scoped, tag = 'scoped memory for seq2seq_forward.1']
  #allocation3 [shape = 'u8[512]{0}', space=smem, size = 0x200, scoped, tag = 'prefetched SMEM operand 0']
  %s0 = inlined_call_operand.vmem [shape: s32[8], index: 0, kind: input, shape index: {}]
  %s1 = inlined_call_operand.vmem [shape: f32[8,8,128], index: 1, kind: input, shape index: {}]
  %s2 = inlined_call_operand.vmem [shape: f32[32,128], index: 2, kind: input, shape index: {}]
  %s3 = inlined_call_operand.vmem [shape: f32[128,128], index: 3, kind: input, shape index: {}]
  %s4 = inlined_call_operand.vmem [shape: f32[32,128], index: 4, kind: input, shape index: {}]
  %s5 = inlined_call_operand.vmem [shape: f32[1,128], index: 5, kind: input, shape index: {}]
  %s6 = inlined_call_operand.vmem [shape: f32[32,128], index: 6, kind: input, shape index: {}]
  %s7 = inlined_call_operand.vmem [shape: f32[1,128], index: 7, kind: input, shape index: {}]
  %s8 = inlined_call_operand.vmem [shape: f32[8,8,128], index: 8, kind: output, shape index: {}]
  %s9 = sld [smem:[#allocation0]]
  $region38: #{seq2seq_forward.1} parent=0
    _
  %s11 = ssub.s32 1, %s9
  %s12 = scalar_select 0, %s11, %s9
  %s14 = sshll.u32 %s0, 4
  %s15 = int_to_ptr.vmem [resolvable:$true] %s14
  %17 = dma.vmem_to_smem %s15, 16, [#allocation3], [#allocation2]
  %19 = dma.done [#allocation2], 16
  %20 = sfence
  // Predicated region
  $region2: #{seq2seq_forward.1} parent=0 // pred_check
    _
  $region3: #{seq2seq_forward.1} parent=0 // pred_check_branch
    %22 = sbr.rel (0) target = $region5
  $region4: #{seq2seq_forward.1} parent=0 // pred_region
    _
  $region5: #{seq2seq_forward.1} parent=0 // pred_fallthru
    _
  // Predicated region
  $region6: #{seq2seq_forward.1} parent=0 // pred_check
    _
  $region7: #{seq2seq_forward.1} parent=0 // pred_check_branch
    %24 = sbr.rel (0) target = $region9
  $region8: #{seq2seq_forward.1} parent=0 // pred_region
    _
  $region9: #{seq2seq_forward.1} parent=0 // pred_fallthru
    _
  // Predicated region
  $region10: #{seq2seq_forward.1} parent=0 // pred_check
    _
  $region11: #{seq2seq_forward.1} parent=0 // pred_check_branch
    %26 = sbr.rel (0) target = $region13
  $region12: #{seq2seq_forward.1} parent=0 // pred_region
    _
  $region13: #{seq2seq_forward.1} parent=0 // pred_fallthru
    _
  // Predicated region
  $region14: #{seq2seq_forward.1} parent=0 // pred_check
    _
  $region15: #{seq2seq_forward.1} parent=0 // pred_check_branch
    %28 = sbr.rel (0) target = $region17
  $region16: #{seq2seq_forward.1} parent=0 // pred_region
    _
  $region17: #{seq2seq_forward.1} parent=0 // pred_fallthru
    _
  // Predicated region
  $region18: #{seq2seq_forward.1} parent=0 // pred_check
    _
  $region19: #{seq2seq_forward.1} parent=0 // pred_check_branch
    %30 = sbr.rel (0) target = $region21
  $region20: #{seq2seq_forward.1} parent=0 // pred_region
    _
  $region21: #{seq2seq_forward.1} parent=0 // pred_fallthru
    _
  // Predicated region
  $region22: #{seq2seq_forward.1} parent=0 // pred_check
    _
  $region23: #{seq2seq_forward.1} parent=0 // pred_check_branch
    %32 = sbr.rel (0) target = $region25
  $region24: #{seq2seq_forward.1} parent=0 // pred_region
    _
  $region25: #{seq2seq_forward.1} parent=0 // pred_fallthru
    _
  // Predicated region
  $region26: #{seq2seq_forward.1} parent=0 // pred_check
    _
  $region27: #{seq2seq_forward.1} parent=0 // pred_check_branch
    %34 = sbr.rel (0) target = $region29
  $region28: #{seq2seq_forward.1} parent=0 // pred_region
    _
  $region29: #{seq2seq_forward.1} parent=0 // pred_fallthru
    _
  %v35 = vld [vmem:[%s1] sm:$0xff]
  %v36 = vld [vmem:[%s2] sm:$0xff]
  %v37 = vld [vmem:[%s2 + $0x8] sm:$0xff]
  %v38 = vld [vmem:[%s2 + $0x10] sm:$0xff]
  %v39 = vld [vmem:[%s2 + $0x18] sm:$0xff]
  %vm40 = vcmask 261120
  %v42 = vsel %vm40, 0.0, 0
  %44 = vmatpush.msra.mxu0 0.0
  %45 = vmatpush.msra.mxu0 0.0
  %46 = vmatpush.msra.mxu0 0.0
  %47 = vmatpush.msra.mxu0 0.0
  %48 = vmatpush.msra.mxu0 0.0
  %49 = vmatpush.msra.mxu0 0.0
  %50 = vmatpush.msra.mxu0 0.0
  %51 = vmatpush.msra.mxu0 0.0
  %52 = vmatpush.msra.mxu0 0.0
  %53 = vmatpush.msra.mxu0 0.0
  %54 = vmatpush.msra.mxu0 0.0
  %55 = vmatpush.msra.mxu0 0.0
  %56 = vmatpush.msra.mxu0 %v39
  %57 = vmatpush.msra.mxu0 %v38
  %58 = vmatpush.msra.mxu0 %v37
  %59 = vmatpush.msra.mxu0 %v36
  %60 = vmatmul.f32.gmra.mxu0 %v42
  %v61 = vpop.f32.mrf.mxu0
  %v62 = vadd.f32 0.0, %v61
  %63 = vdwg.mxu0
  %v64 = vadd.f32 %v35, %v62
  %v65 = vxor.u32 %v64, 2147483648
  %v66 = vmul.f32 %v65, 1.442695
  %v67 = vpow.pop %v66
  %v68 = vadd.f32 %v67, 1.0
  %v69 = vrcp.pop %v68
  %v70 = vmul.f32 %v68, %v69
  %v71 = vsub.f32 1.0, %v70
  %v72 = vmul.f32 %v69, %v71
  %v73 = vadd.f32 %v69, %v72
  %vm74 = vweird.f32 %v68
  %vm75 = vweird.f32 %v69
  %vm76 = vmor %vm74, %vm75
  %v77 = vsel %vm76, %v69, %v73
  %v78 = vand.u32 2147483647, %v68
  %vm79 = vcmp.eq.f32.partialorder %v78, 8.507059e+37
  %v80 = vand.u32 %v68, 2147483648
  %v81 = vor.u32 1.1754944e-38, %v80
  %v82 = vsel %vm79, %v81, %v77
  %v83 = vmul.f32 1.0, %v82
  %v84 = vtanh.pop %v64
  %v85 = vmul.f32 %v83, 0.0
  %87 = vrot.lane.b32.xlu0 %v84, 64
  %v88 = vpop.permute.xlu0 %87
  %v90 = vmul.f32 %v83, %v88
  %92 = vrot.lane.b32.xlu0 %v90, 32
  %v93 = vpop.permute.xlu0 %92
  %v95 = vadd.f32 %v85, %v93
  %v96 = vtanh.pop %v95
  %98 = vrot.lane.b32.xlu0 %v96, 64
  %v99 = vpop.permute.xlu0 %98
  %v101 = vmul.f32 %v83, %v99
  %s102 = scalar_lea.vmem %s1, 8
  %v103 = vld [vmem:[%s102] sm:$0xff]
  %105 = vrot.lane.b32.xlu0 %v101, 32
  %v106 = vpop.permute.xlu0 %105
  %v107 = vsel %vm40, %v106, 0
  %109 = vmatpush.msra.mxu0 0.0
  %110 = vmatpush.msra.mxu0 0.0
  %111 = vmatpush.msra.mxu0 0.0
  %112 = vmatpush.msra.mxu0 0.0
  %113 = vmatpush.msra.mxu0 0.0
  %114 = vmatpush.msra.mxu0 0.0
  %115 = vmatpush.msra.mxu0 0.0
  %116 = vmatpush.msra.mxu0 0.0
  %117 = vmatpush.msra.mxu0 0.0
  %118 = vmatpush.msra.mxu0 0.0
  %119 = vmatpush.msra.mxu0 0.0
  %120 = vmatpush.msra.mxu0 0.0
  %121 = vmatpush.msra.mxu0 %v39
  %122 = vmatpush.msra.mxu0 %v38
  %123 = vmatpush.msra.mxu0 %v37
  %124 = vmatpush.msra.mxu0 %v36
  %125 = vmatmul.f32.gmra.mxu0 %v107
  %v126 = vpop.f32.mrf.mxu0
  %v127 = vadd.f32 0.0, %v126
  %128 = vdwg.mxu0
  %v129 = vadd.f32 %v103, %v127
  %v130 = vxor.u32 %v129, 2147483648
  %v131 = vmul.f32 %v130, 1.442695
  %v132 = vpow.pop %v131
  %v133 = vadd.f32 %v132, 1.0
  %v134 = vrcp.pop %v133
  %v135 = vmul.f32 %v133, %v134
  %v136 = vsub.f32 1.0, %v135
  %v137 = vmul.f32 %v134, %v136
  %v138 = vadd.f32 %v134, %v137
  %vm139 = vweird.f32 %v133
  %vm140 = vweird.f32 %v134
  %vm141 = vmor %vm139, %vm140
  %v142 = vsel %vm141, %v134, %v138
  %v143 = vand.u32 2147483647, %v133
  %vm144 = vcmp.eq.f32.partialorder %v143, 8.507059e+37
  %v145 = vand.u32 %v133, 2147483648
  %v146 = vor.u32 1.1754944e-38, %v145
  %v147 = vsel %vm144, %v146, %v142
  %v148 = vmul.f32 1.0, %v147
  %v149 = vtanh.pop %v129
  %v150 = vmul.f32 %v148, %v95
  %152 = vrot.lane.b32.xlu0 %v149, 64
  %v153 = vpop.permute.xlu0 %152
  %v155 = vmul.f32 %v148, %v153
  %157 = vrot.lane.b32.xlu0 %v155, 32
  %v158 = vpop.permute.xlu0 %157
  %v160 = vadd.f32 %v150, %v158
  %v161 = vtanh.pop %v160
  %163 = vrot.lane.b32.xlu0 %v161, 64
  %v164 = vpop.permute.xlu0 %163
  %v166 = vmul.f32 %v148, %v164
  %s167 = scalar_lea.vmem %s1, 16
  %v168 = vld [vmem:[%s167] sm:$0xff]
  %170 = vrot.lane.b32.xlu0 %v166, 32
  %v171 = vpop.permute.xlu0 %170
  %v172 = vsel %vm40, %v171, 0
  %174 = vmatpush.msra.mxu0 0.0
  %175 = vmatpush.msra.mxu0 0.0
  %176 = vmatpush.msra.mxu0 0.0
  %177 = vmatpush.msra.mxu0 0.0
  %178 = vmatpush.msra.mxu0 0.0
  %179 = vmatpush.msra.mxu0 0.0
  %180 = vmatpush.msra.mxu0 0.0
  %181 = vmatpush.msra.mxu0 0.0
  %182 = vmatpush.msra.mxu0 0.0
  %183 = vmatpush.msra.mxu0 0.0
  %184 = vmatpush.msra.mxu0 0.0
  %185 = vmatpush.msra.mxu0 0.0
  %186 = vmatpush.msra.mxu0 %v39
  %187 = vmatpush.msra.mxu0 %v38
  %188 = vmatpush.msra.mxu0 %v37
  %189 = vmatpush.msra.mxu0 %v36
  %190 = vmatmul.f32.gmra.mxu0 %v172
  %v191 = vpop.f32.mrf.mxu0
  %v192 = vadd.f32 0.0, %v191
  %193 = vdwg.mxu0
  %v194 = vadd.f32 %v168, %v192
  %v195 = vxor.u32 %v194, 2147483648
  %v196 = vmul.f32 %v195, 1.442695
  %v197 = vpow.pop %v196
  %v198 = vadd.f32 %v197, 1.0
  %v199 = vrcp.pop %v198
  %v200 = vmul.f32 %v198, %v199
  %v201 = vsub.f32 1.0, %v200
  %v202 = vmul.f32 %v199, %v201
  %v203 = vadd.f32 %v199, %v202
  %vm204 = vweird.f32 %v198
  %vm205 = vweird.f32 %v199
  %vm206 = vmor %vm204, %vm205
  %v207 = vsel %vm206, %v199, %v203
  %v208 = vand.u32 2147483647, %v198
  %vm209 = vcmp.eq.f32.partialorder %v208, 8.507059e+37
  %v210 = vand.u32 %v198, 2147483648
  %v211 = vor.u32 1.1754944e-38, %v210
  %v212 = vsel %vm209, %v211, %v207
  %v213 = vmul.f32 1.0, %v212
  %v214 = vtanh.pop %v194
  %v215 = vmul.f32 %v213, %v160
  %217 = vrot.lane.b32.xlu0 %v214, 64
  %v218 = vpop.permute.xlu0 %217
  %v220 = vmul.f32 %v213, %v218
  %222 = vrot.lane.b32.xlu0 %v220, 32
  %v223 = vpop.permute.xlu0 %222
  %v225 = vadd.f32 %v215, %v223
  %v226 = vtanh.pop %v225
  %228 = vrot.lane.b32.xlu0 %v226, 64
  %v229 = vpop.permute.xlu0 %228
  %v231 = vmul.f32 %v213, %v229
  %s232 = scalar_lea.vmem %s1, 24
  %v233 = vld [vmem:[%s232] sm:$0xff]
  %235 = vrot.lane.b32.xlu0 %v231, 32
  %v236 = vpop.permute.xlu0 %235
  %v237 = vsel %vm40, %v236, 0
  %239 = vmatpush.msra.mxu0 0.0
  %240 = vmatpush.msra.mxu0 0.0
  %241 = vmatpush.msra.mxu0 0.0
  %242 = vmatpush.msra.mxu0 0.0
  %243 = vmatpush.msra.mxu0 0.0
  %244 = vmatpush.msra.mxu0 0.0
  %245 = vmatpush.msra.mxu0 0.0
  %246 = vmatpush.msra.mxu0 0.0
  %247 = vmatpush.msra.mxu0 0.0
  %248 = vmatpush.msra.mxu0 0.0
  %249 = vmatpush.msra.mxu0 0.0
  %250 = vmatpush.msra.mxu0 0.0
  %251 = vmatpush.msra.mxu0 %v39
  %252 = vmatpush.msra.mxu0 %v38
  %253 = vmatpush.msra.mxu0 %v37
  %254 = vmatpush.msra.mxu0 %v36
  %255 = vmatmul.f32.gmra.mxu0 %v237
  %v256 = vpop.f32.mrf.mxu0
  %v257 = vadd.f32 0.0, %v256
  %258 = vdwg.mxu0
  %v259 = vadd.f32 %v233, %v257
  %v260 = vxor.u32 %v259, 2147483648
  %v261 = vmul.f32 %v260, 1.442695
  %v262 = vpow.pop %v261
  %v263 = vadd.f32 %v262, 1.0
  %v264 = vrcp.pop %v263
  %v265 = vmul.f32 %v263, %v264
  %v266 = vsub.f32 1.0, %v265
  %v267 = vmul.f32 %v264, %v266
  %v268 = vadd.f32 %v264, %v267
  %vm269 = vweird.f32 %v263
  %vm270 = vweird.f32 %v264
  %vm271 = vmor %vm269, %vm270
  %v272 = vsel %vm271, %v264, %v268
  %v273 = vand.u32 2147483647, %v263
  %vm274 = vcmp.eq.f32.partialorder %v273, 8.507059e+37
  %v275 = vand.u32 %v263, 2147483648
  %v276 = vor.u32 1.1754944e-38, %v275
  %v277 = vsel %vm274, %v276, %v272
  %v278 = vmul.f32 1.0, %v277
  %v279 = vtanh.pop %v259
  %v280 = vmul.f32 %v278, %v225
  %282 = vrot.lane.b32.xlu0 %v279, 64
  %v283 = vpop.permute.xlu0 %282
  %v285 = vmul.f32 %v278, %v283
  %287 = vrot.lane.b32.xlu0 %v285, 32
  %v288 = vpop.permute.xlu0 %287
  %v290 = vadd.f32 %v280, %v288
  %v291 = vtanh.pop %v290
  %293 = vrot.lane.b32.xlu0 %v291, 64
  %v294 = vpop.permute.xlu0 %293
  %v296 = vmul.f32 %v278, %v294
  %s297 = scalar_lea.vmem %s1, 32
  %v298 = vld [vmem:[%s297] sm:$0xff]
  %300 = vrot.lane.b32.xlu0 %v296, 32
  %v301 = vpop.permute.xlu0 %300
  %v302 = vsel %vm40, %v301, 0
  %304 = vmatpush.msra.mxu0 0.0
  %305 = vmatpush.msra.mxu0 0.0
  %306 = vmatpush.msra.mxu0 0.0
  %307 = vmatpush.msra.mxu0 0.0
  %308 = vmatpush.msra.mxu0 0.0
  %309 = vmatpush.msra.mxu0 0.0
  %310 = vmatpush.msra.mxu0 0.0
  %311 = vmatpush.msra.mxu0 0.0
  %312 = vmatpush.msra.mxu0 0.0
  %313 = vmatpush.msra.mxu0 0.0
  %314 = vmatpush.msra.mxu0 0.0
  %315 = vmatpush.msra.mxu0 0.0
  %316 = vmatpush.msra.mxu0 %v39
  %317 = vmatpush.msra.mxu0 %v38
  %318 = vmatpush.msra.mxu0 %v37
  %319 = vmatpush.msra.mxu0 %v36
  %320 = vmatmul.f32.gmra.mxu0 %v302
  %v321 = vpop.f32.mrf.mxu0
  %v322 = vadd.f32 0.0, %v321
  %323 = vdwg.mxu0
  %v324 = vadd.f32 %v298, %v322
  %v325 = vxor.u32 %v324, 2147483648
  %v326 = vmul.f32 %v325, 1.442695
  %v327 = vpow.pop %v326
  %v328 = vadd.f32 %v327, 1.0
  %v329 = vrcp.pop %v328
  %v330 = vmul.f32 %v328, %v329
  %v331 = vsub.f32 1.0, %v330
  %v332 = vmul.f32 %v329, %v331
  %v333 = vadd.f32 %v329, %v332
  %vm334 = vweird.f32 %v328
  %vm335 = vweird.f32 %v329
  %vm336 = vmor %vm334, %vm335
  %v337 = vsel %vm336, %v329, %v333
  %v338 = vand.u32 2147483647, %v328
  %vm339 = vcmp.eq.f32.partialorder %v338, 8.507059e+37
  %v340 = vand.u32 %v328, 2147483648
  %v341 = vor.u32 1.1754944e-38, %v340
  %v342 = vsel %vm339, %v341, %v337
  %v343 = vmul.f32 1.0, %v342
  %v344 = vtanh.pop %v324
  %v345 = vmul.f32 %v343, %v290
  %347 = vrot.lane.b32.xlu0 %v344, 64
  %v348 = vpop.permute.xlu0 %347
  %v350 = vmul.f32 %v343, %v348
  %352 = vrot.lane.b32.xlu0 %v350, 32
  %v353 = vpop.permute.xlu0 %352
  %v355 = vadd.f32 %v345, %v353
  %v356 = vtanh.pop %v355
  %358 = vrot.lane.b32.xlu0 %v356, 64
  %v359 = vpop.permute.xlu0 %358
  %v361 = vmul.f32 %v343, %v359
  %s362 = scalar_lea.vmem %s1, 40
  %v363 = vld [vmem:[%s362] sm:$0xff]
  %365 = vrot.lane.b32.xlu0 %v361, 32
  %v366 = vpop.permute.xlu0 %365
  %v367 = vsel %vm40, %v366, 0
  %369 = vmatpush.msra.mxu0 0.0
  %370 = vmatpush.msra.mxu0 0.0
  %371 = vmatpush.msra.mxu0 0.0
  %372 = vmatpush.msra.mxu0 0.0
  %373 = vmatpush.msra.mxu0 0.0
  %374 = vmatpush.msra.mxu0 0.0
  %375 = vmatpush.msra.mxu0 0.0
  %376 = vmatpush.msra.mxu0 0.0
  %377 = vmatpush.msra.mxu0 0.0
  %378 = vmatpush.msra.mxu0 0.0
  %379 = vmatpush.msra.mxu0 0.0
  %380 = vmatpush.msra.mxu0 0.0
  %381 = vmatpush.msra.mxu0 %v39
  %382 = vmatpush.msra.mxu0 %v38
  %383 = vmatpush.msra.mxu0 %v37
  %384 = vmatpush.msra.mxu0 %v36
  %385 = vmatmul.f32.gmra.mxu0 %v367
  %v386 = vpop.f32.mrf.mxu0
  %v387 = vadd.f32 0.0, %v386
  %388 = vdwg.mxu0
  %v389 = vadd.f32 %v363, %v387
  %v390 = vxor.u32 %v389, 2147483648
  %v391 = vmul.f32 %v390, 1.442695
  %v392 = vpow.pop %v391
  %v393 = vadd.f32 %v392, 1.0
  %v394 = vrcp.pop %v393
  %v395 = vmul.f32 %v393, %v394
  %v396 = vsub.f32 1.0, %v395
  %v397 = vmul.f32 %v394, %v396
  %v398 = vadd.f32 %v394, %v397
  %vm399 = vweird.f32 %v393
  %vm400 = vweird.f32 %v394
  %vm401 = vmor %vm399, %vm400
  %v402 = vsel %vm401, %v394, %v398
  %v403 = vand.u32 2147483647, %v393
  %vm404 = vcmp.eq.f32.partialorder %v403, 8.507059e+37
  %v405 = vand.u32 %v393, 2147483648
  %v406 = vor.u32 1.1754944e-38, %v405
  %v407 = vsel %vm404, %v406, %v402
  %v408 = vmul.f32 1.0, %v407
  %v409 = vtanh.pop %v389
  %v410 = vmul.f32 %v408, %v355
  %412 = vrot.lane.b32.xlu0 %v409, 64
  %v413 = vpop.permute.xlu0 %412
  %v415 = vmul.f32 %v408, %v413
  %417 = vrot.lane.b32.xlu0 %v415, 32
  %v418 = vpop.permute.xlu0 %417
  %v420 = vadd.f32 %v410, %v418
  %v421 = vtanh.pop %v420
  %423 = vrot.lane.b32.xlu0 %v421, 64
  %v424 = vpop.permute.xlu0 %423
  %v426 = vmul.f32 %v408, %v424
  %s427 = scalar_lea.vmem %s1, 48
  %v428 = vld [vmem:[%s427] sm:$0xff]
  %430 = vrot.lane.b32.xlu0 %v426, 32
  %v431 = vpop.permute.xlu0 %430
  %v432 = vsel %vm40, %v431, 0
  %434 = vmatpush.msra.mxu0 0.0
  %435 = vmatpush.msra.mxu0 0.0
  %436 = vmatpush.msra.mxu0 0.0
  %437 = vmatpush.msra.mxu0 0.0
  %438 = vmatpush.msra.mxu0 0.0
  %439 = vmatpush.msra.mxu0 0.0
  %440 = vmatpush.msra.mxu0 0.0
  %441 = vmatpush.msra.mxu0 0.0
  %442 = vmatpush.msra.mxu0 0.0
  %443 = vmatpush.msra.mxu0 0.0
  %444 = vmatpush.msra.mxu0 0.0
  %445 = vmatpush.msra.mxu0 0.0
  %446 = vmatpush.msra.mxu0 %v39
  %447 = vmatpush.msra.mxu0 %v38
  %448 = vmatpush.msra.mxu0 %v37
  %449 = vmatpush.msra.mxu0 %v36
  %450 = vmatmul.f32.gmra.mxu0 %v432
  %v451 = vpop.f32.mrf.mxu0
  %v452 = vadd.f32 0.0, %v451
  %453 = vdwg.mxu0
  %v454 = vadd.f32 %v428, %v452
  %v455 = vxor.u32 %v454, 2147483648
  %v456 = vmul.f32 %v455, 1.442695
  %v457 = vpow.pop %v456
  %v458 = vadd.f32 %v457, 1.0
  %v459 = vrcp.pop %v458
  %v460 = vmul.f32 %v458, %v459
  %v461 = vsub.f32 1.0, %v460
  %v462 = vmul.f32 %v459, %v461
  %v463 = vadd.f32 %v459, %v462
  %vm464 = vweird.f32 %v458
  %vm465 = vweird.f32 %v459
  %vm466 = vmor %vm464, %vm465
  %v467 = vsel %vm466, %v459, %v463
  %v468 = vand.u32 2147483647, %v458
  %vm469 = vcmp.eq.f32.partialorder %v468, 8.507059e+37
  %v470 = vand.u32 %v458, 2147483648
  %v471 = vor.u32 1.1754944e-38, %v470
  %v472 = vsel %vm469, %v471, %v467
  %v473 = vmul.f32 1.0, %v472
  %v474 = vtanh.pop %v454
  %v475 = vmul.f32 %v473, %v420
  %477 = vrot.lane.b32.xlu0 %v474, 64
  %v478 = vpop.permute.xlu0 %477
  %v480 = vmul.f32 %v473, %v478
  %482 = vrot.lane.b32.xlu0 %v480, 32
  %v483 = vpop.permute.xlu0 %482
  %v485 = vadd.f32 %v475, %v483
  %v486 = vtanh.pop %v485
  %488 = vrot.lane.b32.xlu0 %v486, 64
  %v489 = vpop.permute.xlu0 %488
  %v491 = vmul.f32 %v473, %v489
  %s492 = scalar_lea.vmem %s1, 56
  %v493 = vld [vmem:[%s492] sm:$0xff]
  %495 = vrot.lane.b32.xlu0 %v491, 32
  %v496 = vpop.permute.xlu0 %495
  %v497 = vsel %vm40, %v496, 0
  %499 = vmatpush.msra.mxu0 0.0
  %500 = vmatpush.msra.mxu0 0.0
  %501 = vmatpush.msra.mxu0 0.0
  %502 = vmatpush.msra.mxu0 0.0
  %503 = vmatpush.msra.mxu0 0.0
  %504 = vmatpush.msra.mxu0 0.0
  %505 = vmatpush.msra.mxu0 0.0
  %506 = vmatpush.msra.mxu0 0.0
  %507 = vmatpush.msra.mxu0 0.0
  %508 = vmatpush.msra.mxu0 0.0
  %509 = vmatpush.msra.mxu0 0.0
  %510 = vmatpush.msra.mxu0 0.0
  %511 = vmatpush.msra.mxu0 %v39
  %512 = vmatpush.msra.mxu0 %v38
  %513 = vmatpush.msra.mxu0 %v37
  %514 = vmatpush.msra.mxu0 %v36
  %515 = vmatmul.f32.gmra.mxu0 %v497
  %v516 = vpop.f32.mrf.mxu0
  %v517 = vadd.f32 0.0, %v516
  %518 = vdwg.mxu0
  %v519 = vadd.f32 %v493, %v517
  %v520 = vxor.u32 %v519, 2147483648
  %v521 = vmul.f32 %v520, 1.442695
  %v522 = vpow.pop %v521
  %v523 = vadd.f32 %v522, 1.0
  %v524 = vrcp.pop %v523
  %v525 = vmul.f32 %v523, %v524
  %v526 = vsub.f32 1.0, %v525
  %v527 = vmul.f32 %v524, %v526
  %v528 = vadd.f32 %v524, %v527
  %vm529 = vweird.f32 %v523
  %vm530 = vweird.f32 %v524
  %vm531 = vmor %vm529, %vm530
  %v532 = vsel %vm531, %v524, %v528
  %v533 = vand.u32 2147483647, %v523
  %vm534 = vcmp.eq.f32.partialorder %v533, 8.507059e+37
  %v535 = vand.u32 %v523, 2147483648
  %v536 = vor.u32 1.1754944e-38, %v535
  %v537 = vsel %vm534, %v536, %v532
  %v538 = vmul.f32 1.0, %v537
  %v539 = vtanh.pop %v519
  %v540 = vmul.f32 %v538, %v485
  %542 = vrot.lane.b32.xlu0 %v539, 64
  %v543 = vpop.permute.xlu0 %542
  %v545 = vmul.f32 %v538, %v543
  %547 = vrot.lane.b32.xlu0 %v545, 32
  %v548 = vpop.permute.xlu0 %547
  %v550 = vadd.f32 %v540, %v548
  %v551 = vtanh.pop %v550
  %553 = vrot.lane.b32.xlu0 %v551, 64
  %v554 = vpop.permute.xlu0 %553
  %v556 = vmul.f32 %v538, %v554
  %557 = vst [vmem:[%s8] sm:$0xff] 0.0
  %v558 = vlaneseq
  %v559 = vshrl.u32 %v558, 7
  %v560 = vlaneseq
  %v561 = vand.u32 %v560, 127
  %vm562 = vcmp.eq.s32.totalorder %v559, 0
  %s563 = sld [smem:[#allocation3]]
  %v564 = vstv %s563
  %v565 = vsel %vm562, %v564, 0
  %vm566 = vcmp.eq.s32.totalorder %v559, 1
  %s567 = sld [smem:[#allocation3 + $0x1]]
  %v568 = vstv %s567
  %v569 = vsel %vm566, %v568, %v565
  %vm570 = vcmp.eq.s32.totalorder %v559, 2
  %s571 = sld [smem:[#allocation3 + $0x2]]
  %v572 = vstv %s571
  %v573 = vsel %vm570, %v572, %v569
  %vm574 = vcmp.eq.s32.totalorder %v559, 3
  %s575 = sld [smem:[#allocation3 + $0x3]]
  %v576 = vstv %s575
  %v577 = vsel %vm574, %v576, %v573
  %vm578 = vcmp.eq.s32.totalorder %v559, 4
  %s579 = sld [smem:[#allocation3 + $0x4]]
  %v580 = vstv %s579
  %v581 = vsel %vm578, %v580, %v577
  %vm582 = vcmp.eq.s32.totalorder %v559, 5
  %s583 = sld [smem:[#allocation3 + $0x5]]
  %v584 = vstv %s583
  %v585 = vsel %vm582, %v584, %v581
  %vm586 = vcmp.eq.s32.totalorder %v559, 6
  %s587 = sld [smem:[#allocation3 + $0x6]]
  %v588 = vstv %s587
  %v589 = vsel %vm586, %v588, %v585
  %vm590 = vcmp.eq.s32.totalorder %v559, 7
  %s591 = sld [smem:[#allocation3 + $0x7]]
  %v592 = vstv %s591
  %v593 = vsel %vm590, %v592, %v589
  %vm594 = vcmp.eq.s32.totalorder %v561, %v593
  %v595 = vsel %vm594, 1, 0
  %v596 = vcvt.s32.f32 %v595
  %v597 = vld [vmem:[%s3] sm:$0xff]
  %v598 = vld [vmem:[%s3 + $0x8] sm:$0xff]
  %v599 = vld [vmem:[%s3 + $0x10] sm:$0xff]
  %v600 = vld [vmem:[%s3 + $0x18] sm:$0xff]
  %v601 = vld [vmem:[%s3 + $0x20] sm:$0xff]
  %v602 = vld [vmem:[%s3 + $0x28] sm:$0xff]
  %v603 = vld [vmem:[%s3 + $0x30] sm:$0xff]
  %v604 = vld [vmem:[%s3 + $0x38] sm:$0xff]
  %v605 = vld [vmem:[%s3 + $0x40] sm:$0xff]
  %v606 = vld [vmem:[%s3 + $0x48] sm:$0xff]
  %v607 = vld [vmem:[%s3 + $0x50] sm:$0xff]
  %v608 = vld [vmem:[%s3 + $0x58] sm:$0xff]
  %v609 = vld [vmem:[%s3 + $0x60] sm:$0xff]
  %v610 = vld [vmem:[%s3 + $0x68] sm:$0xff]
  %v611 = vld [vmem:[%s3 + $0x70] sm:$0xff]
  %v612 = vld [vmem:[%s3 + $0x78] sm:$0xff]
  %v613 = vld [vmem:[%s4] sm:$0xff]
  %v614 = vld [vmem:[%s4 + $0x8] sm:$0xff]
  %v615 = vld [vmem:[%s4 + $0x10] sm:$0xff]
  %v616 = vld [vmem:[%s4 + $0x18] sm:$0xff]
  %618 = vrot.lane.b32.xlu0 %v556, 32
  %v619 = vpop.permute.xlu0 %618
  %v620 = vsel %vm40, %v619, 0
  %622 = vmatpush.msra.mxu0 0.0
  %623 = vmatpush.msra.mxu0 0.0
  %624 = vmatpush.msra.mxu0 0.0
  %625 = vmatpush.msra.mxu0 0.0
  %626 = vmatpush.msra.mxu0 0.0
  %627 = vmatpush.msra.mxu0 0.0
  %628 = vmatpush.msra.mxu0 0.0
  %629 = vmatpush.msra.mxu0 0.0
  %630 = vmatpush.msra.mxu0 0.0
  %631 = vmatpush.msra.mxu0 0.0
  %632 = vmatpush.msra.mxu0 0.0
  %633 = vmatpush.msra.mxu0 0.0
  %634 = vmatpush.msra.mxu0 %v616
  %635 = vmatpush.msra.mxu0 %v615
  %636 = vmatpush.msra.mxu0 %v614
  %637 = vmatpush.msra.mxu0 %v613
  %638 = vmatmul.f32.gmra.mxu0 %v620
  %v639 = vpop.f32.mrf.mxu0
  %v640 = vadd.f32 0.0, %v639
  %641 = vdwg.mxu0
  %642 = vmatpush.msra.mxu0 %v612
  %643 = vmatpush.msra.mxu0 %v611
  %644 = vmatpush.msra.mxu0 %v610
  %645 = vmatpush.msra.mxu0 %v609
  %646 = vmatpush.msra.mxu0 %v608
  %647 = vmatpush.msra.mxu0 %v607
  %648 = vmatpush.msra.mxu0 %v606
  %649 = vmatpush.msra.mxu0 %v605
  %650 = vmatpush.msra.mxu0 %v604
  %651 = vmatpush.msra.mxu0 %v603
  %652 = vmatpush.msra.mxu0 %v602
  %653 = vmatpush.msra.mxu0 %v601
  %654 = vmatpush.msra.mxu0 %v600
  %655 = vmatpush.msra.mxu0 %v599
  %656 = vmatpush.msra.mxu0 %v598
  %657 = vmatpush.msra.mxu0 %v597
  %658 = vmatmul.f32.gmra.mxu0 %v596
  %v659 = vpop.f32.mrf.mxu0
  %v660 = vadd.f32 %v640, %v659
  %661 = vdwg.mxu0
  %v662 = vld [vmem:[%s5] sm:$0x1]
  %v664 = vperm.slane %v662, 0
  %v666 = vadd.f32 %v660, %v664
  %v667 = vxor.u32 %v666, 2147483648
  %v668 = vmul.f32 %v667, 1.442695
  %v669 = vpow.pop %v668
  %v670 = vadd.f32 %v669, 1.0
  %v671 = vrcp.pop %v670
  %v672 = vmul.f32 %v670, %v671
  %v673 = vsub.f32 1.0, %v672
  %v674 = vmul.f32 %v671, %v673
  %v675 = vadd.f32 %v671, %v674
  %vm676 = vweird.f32 %v670
  %vm677 = vweird.f32 %v671
  %vm678 = vmor %vm676, %vm677
  %v679 = vsel %vm678, %v671, %v675
  %v680 = vand.u32 2147483647, %v670
  %vm681 = vcmp.eq.f32.partialorder %v680, 8.507059e+37
  %v682 = vand.u32 %v670, 2147483648
  %v683 = vor.u32 1.1754944e-38, %v682
  %v684 = vsel %vm681, %v683, %v679
  %v685 = vmul.f32 1.0, %v684
  %v686 = vtanh.pop %v666
  %v687 = vmul.f32 %v685, %v550
  %689 = vrot.lane.b32.xlu0 %v686, 64
  %v690 = vpop.permute.xlu0 %689
  %v692 = vmul.f32 %v685, %v690
  %694 = vrot.lane.b32.xlu0 %v692, 32
  %v695 = vpop.permute.xlu0 %694
  %v697 = vadd.f32 %v687, %v695
  %v698 = vtanh.pop %v697
  %700 = vrot.lane.b32.xlu0 %v698, 64
  %v701 = vpop.permute.xlu0 %700
  %v703 = vmul.f32 %v685, %v701
  %v704 = vld [vmem:[%s6] sm:$0xff]
  %v705 = vld [vmem:[%s6 + $0x8] sm:$0xff]
  %v706 = vld [vmem:[%s6 + $0x10] sm:$0xff]
  %v707 = vld [vmem:[%s6 + $0x18] sm:$0xff]
  %v708 = vld [vmem:[%s7] sm:$0x1]
  %v710 = vperm.slane %v708, 0
  %713 = vrot.lane.b32.xlu0 %v703, 32
  %v714 = vpop.permute.xlu0 %713
  %v715 = vsel %vm40, %v714, 0
  %717 = vmatpush.msra.mxu0 0.0
  %718 = vmatpush.msra.mxu0 0.0
  %719 = vmatpush.msra.mxu0 0.0
  %720 = vmatpush.msra.mxu0 0.0
  %721 = vmatpush.msra.mxu0 0.0
  %722 = vmatpush.msra.mxu0 0.0
  %723 = vmatpush.msra.mxu0 0.0
  %724 = vmatpush.msra.mxu0 0.0
  %725 = vmatpush.msra.mxu0 0.0
  %726 = vmatpush.msra.mxu0 0.0
  %727 = vmatpush.msra.mxu0 0.0
  %728 = vmatpush.msra.mxu0 0.0
  %729 = vmatpush.msra.mxu0 %v707
  %730 = vmatpush.msra.mxu0 %v706
  %731 = vmatpush.msra.mxu0 %v705
  %732 = vmatpush.msra.mxu0 %v704
  %733 = vmatmul.f32.gmra.mxu0 %v715
  %v734 = vpop.f32.mrf.mxu0
  %v735 = vadd.f32 %v710, %v734
  %736 = vdwg.mxu0
  %s737 = scalar_lea.vmem %s8, 8
  %738 = vst [vmem:[%s737] sm:$0xff] %v735
  %739 = vmax.xlane.f32.xlu0 %v735
  %v740 = vpop.xlane.xlu0 %739
  %vm741 = vcmp.eq.f32.partialorder %v735, %v740
  %v742 = vsel %vm741, %v561, 128
  %v743 = vand.u32 %v742, 65535
  %v744 = vshra.s32 %v742, 16
  %v745 = vcvt.s32.f32 %v743
  %v746 = vcvt.s32.f32 %v744
  %747 = vmin.xlane.f32.xlu0 %v746
  %v748 = vpop.xlane.xlu0 %747
  %vm749 = vcmp.eq.f32.partialorder %v746, %v748
  %v750 = vsel %vm749, %v745, inf
  %751 = vmin.xlane.f32.xlu0 %v750
  %v752 = vpop.xlane.xlu0 %751
  %v753 = vcvt.f32.s32 %v752
  %v754 = vcvt.f32.s32 %v748
  %v755 = vshll.u32 %v754, 16
  %v756 = vadd.s32 %v755, %v753
  %vm757 = vcmp.eq.s32.totalorder %v561, %v756
  %v758 = vsel %vm757, 1, 0
  %v759 = vcvt.s32.f32 %v758
  %v760 = vld [vmem:[%s3] sm:$0xff]
  %v761 = vld [vmem:[%s3 + $0x8] sm:$0xff]
  %v762 = vld [vmem:[%s3 + $0x10] sm:$0xff]
  %v763 = vld [vmem:[%s3 + $0x18] sm:$0xff]
  %v764 = vld [vmem:[%s3 + $0x20] sm:$0xff]
  %v765 = vld [vmem:[%s3 + $0x28] sm:$0xff]
  %v766 = vld [vmem:[%s3 + $0x30] sm:$0xff]
  %v767 = vld [vmem:[%s3 + $0x38] sm:$0xff]
  %v768 = vld [vmem:[%s3 + $0x40] sm:$0xff]
  %v769 = vld [vmem:[%s3 + $0x48] sm:$0xff]
  %v770 = vld [vmem:[%s3 + $0x50] sm:$0xff]
  %v771 = vld [vmem:[%s3 + $0x58] sm:$0xff]
  %v772 = vld [vmem:[%s3 + $0x60] sm:$0xff]
  %v773 = vld [vmem:[%s3 + $0x68] sm:$0xff]
  %v774 = vld [vmem:[%s3 + $0x70] sm:$0xff]
  %v775 = vld [vmem:[%s3 + $0x78] sm:$0xff]
  %v776 = vld [vmem:[%s4] sm:$0xff]
  %v777 = vld [vmem:[%s4 + $0x8] sm:$0xff]
  %v778 = vld [vmem:[%s4 + $0x10] sm:$0xff]
  %v779 = vld [vmem:[%s4 + $0x18] sm:$0xff]
  %780 = vmatpush.msra.mxu0 0.0
  %781 = vmatpush.msra.mxu0 0.0
  %782 = vmatpush.msra.mxu0 0.0
  %783 = vmatpush.msra.mxu0 0.0
  %784 = vmatpush.msra.mxu0 0.0
  %785 = vmatpush.msra.mxu0 0.0
  %786 = vmatpush.msra.mxu0 0.0
  %787 = vmatpush.msra.mxu0 0.0
  %788 = vmatpush.msra.mxu0 0.0
  %789 = vmatpush.msra.mxu0 0.0
  %790 = vmatpush.msra.mxu0 0.0
  %791 = vmatpush.msra.mxu0 0.0
  %792 = vmatpush.msra.mxu0 %v779
  %793 = vmatpush.msra.mxu0 %v778
  %794 = vmatpush.msra.mxu0 %v777
  %795 = vmatpush.msra.mxu0 %v776
  %796 = vmatmul.f32.gmra.mxu0 %v715
  %v797 = vpop.f32.mrf.mxu0
  %v798 = vadd.f32 0.0, %v797
  %799 = vdwg.mxu0
  %800 = vmatpush.msra.mxu0 %v775
  %801 = vmatpush.msra.mxu0 %v774
  %802 = vmatpush.msra.mxu0 %v773
  %803 = vmatpush.msra.mxu0 %v772
  %804 = vmatpush.msra.mxu0 %v771
  %805 = vmatpush.msra.mxu0 %v770
  %806 = vmatpush.msra.mxu0 %v769
  %807 = vmatpush.msra.mxu0 %v768
  %808 = vmatpush.msra.mxu0 %v767
  %809 = vmatpush.msra.mxu0 %v766
  %810 = vmatpush.msra.mxu0 %v765
  %811 = vmatpush.msra.mxu0 %v764
  %812 = vmatpush.msra.mxu0 %v763
  %813 = vmatpush.msra.mxu0 %v762
  %814 = vmatpush.msra.mxu0 %v761
  %815 = vmatpush.msra.mxu0 %v760
  %816 = vmatmul.f32.gmra.mxu0 %v759
  %v817 = vpop.f32.mrf.mxu0
  %v818 = vadd.f32 %v798, %v817
  %819 = vdwg.mxu0
  %v820 = vld [vmem:[%s5] sm:$0x1]
  %v822 = vperm.slane %v820, 0
  %v824 = vadd.f32 %v818, %v822
  %v825 = vxor.u32 %v824, 2147483648
  %v826 = vmul.f32 %v825, 1.442695
  %v827 = vpow.pop %v826
  %v828 = vadd.f32 %v827, 1.0
  %v829 = vrcp.pop %v828
  %v830 = vmul.f32 %v828, %v829
  %v831 = vsub.f32 1.0, %v830
  %v832 = vmul.f32 %v829, %v831
  %v833 = vadd.f32 %v829, %v832
  %vm834 = vweird.f32 %v828
  %vm835 = vweird.f32 %v829
  %vm836 = vmor %vm834, %vm835
  %v837 = vsel %vm836, %v829, %v833
  %v838 = vand.u32 2147483647, %v828
  %vm839 = vcmp.eq.f32.partialorder %v838, 8.507059e+37
  %v840 = vand.u32 %v828, 2147483648
  %v841 = vor.u32 1.1754944e-38, %v840
  %v842 = vsel %vm839, %v841, %v837
  %v843 = vmul.f32 1.0, %v842
  %v844 = vtanh.pop %v824
  %v845 = vmul.f32 %v843, %v697
  %847 = vrot.lane.b32.xlu0 %v844, 64
  %v848 = vpop.permute.xlu0 %847
  %v850 = vmul.f32 %v843, %v848
  %852 = vrot.lane.b32.xlu0 %v850, 32
  %v853 = vpop.permute.xlu0 %852
  %v855 = vadd.f32 %v845, %v853
  %v856 = vtanh.pop %v855
  %858 = vrot.lane.b32.xlu0 %v856, 64
  %v859 = vpop.permute.xlu0 %858
  %v861 = vmul.f32 %v843, %v859
  %v862 = vld [vmem:[%s6] sm:$0xff]
  %v863 = vld [vmem:[%s6 + $0x8] sm:$0xff]
  %v864 = vld [vmem:[%s6 + $0x10] sm:$0xff]
  %v865 = vld [vmem:[%s6 + $0x18] sm:$0xff]
  %v866 = vld [vmem:[%s7] sm:$0x1]
  %v868 = vperm.slane %v866, 0
  %871 = vrot.lane.b32.xlu0 %v861, 32
  %v872 = vpop.permute.xlu0 %871
  %v873 = vsel %vm40, %v872, 0
  %875 = vmatpush.msra.mxu0 0.0
  %876 = vmatpush.msra.mxu0 0.0
  %877 = vmatpush.msra.mxu0 0.0
  %878 = vmatpush.msra.mxu0 0.0
  %879 = vmatpush.msra.mxu0 0.0
  %880 = vmatpush.msra.mxu0 0.0
  %881 = vmatpush.msra.mxu0 0.0
  %882 = vmatpush.msra.mxu0 0.0
  %883 = vmatpush.msra.mxu0 0.0
  %884 = vmatpush.msra.mxu0 0.0
  %885 = vmatpush.msra.mxu0 0.0
  %886 = vmatpush.msra.mxu0 0.0
  %887 = vmatpush.msra.mxu0 %v865
  %888 = vmatpush.msra.mxu0 %v864
  %889 = vmatpush.msra.mxu0 %v863
  %890 = vmatpush.msra.mxu0 %v862
  %891 = vmatmul.f32.gmra.mxu0 %v873
  %v892 = vpop.f32.mrf.mxu0
  %v893 = vadd.f32 %v868, %v892
  %894 = vdwg.mxu0
  %s895 = scalar_lea.vmem %s8, 16
  %896 = vst [vmem:[%s895] sm:$0xff] %v893
  %897 = vmax.xlane.f32.xlu0 %v893
  %v898 = vpop.xlane.xlu0 %897
  %vm899 = vcmp.eq.f32.partialorder %v893, %v898
  %v900 = vsel %vm899, %v561, 128
  %v901 = vand.u32 %v900, 65535
  %v902 = vshra.s32 %v900, 16
  %v903 = vcvt.s32.f32 %v901
  %v904 = vcvt.s32.f32 %v902
  %905 = vmin.xlane.f32.xlu0 %v904
  %v906 = vpop.xlane.xlu0 %905
  %vm907 = vcmp.eq.f32.partialorder %v904, %v906
  %v908 = vsel %vm907, %v903, inf
  %909 = vmin.xlane.f32.xlu0 %v908
  %v910 = vpop.xlane.xlu0 %909
  %v911 = vcvt.f32.s32 %v910
  %v912 = vcvt.f32.s32 %v906
  %v913 = vshll.u32 %v912, 16
  %v914 = vadd.s32 %v913, %v911
  %vm915 = vcmp.eq.s32.totalorder %v561, %v914
  %v916 = vsel %vm915, 1, 0
  %v917 = vcvt.s32.f32 %v916
  %v918 = vld [vmem:[%s3] sm:$0xff]
  %v919 = vld [vmem:[%s3 + $0x8] sm:$0xff]
  %v920 = vld [vmem:[%s3 + $0x10] sm:$0xff]
  %v921 = vld [vmem:[%s3 + $0x18] sm:$0xff]
  %v922 = vld [vmem:[%s3 + $0x20] sm:$0xff]
  %v923 = vld [vmem:[%s3 + $0x28] sm:$0xff]
  %v924 = vld [vmem:[%s3 + $0x30] sm:$0xff]
  %v925 = vld [vmem:[%s3 + $0x38] sm:$0xff]
  %v926 = vld [vmem:[%s3 + $0x40] sm:$0xff]
  %v927 = vld [vmem:[%s3 + $0x48] sm:$0xff]
  %v928 = vld [vmem:[%s3 + $0x50] sm:$0xff]
  %v929 = vld [vmem:[%s3 + $0x58] sm:$0xff]
  %v930 = vld [vmem:[%s3 + $0x60] sm:$0xff]
  %v931 = vld [vmem:[%s3 + $0x68] sm:$0xff]
  %v932 = vld [vmem:[%s3 + $0x70] sm:$0xff]
  %v933 = vld [vmem:[%s3 + $0x78] sm:$0xff]
  %v934 = vld [vmem:[%s4] sm:$0xff]
  %v935 = vld [vmem:[%s4 + $0x8] sm:$0xff]
  %v936 = vld [vmem:[%s4 + $0x10] sm:$0xff]
  %v937 = vld [vmem:[%s4 + $0x18] sm:$0xff]
  %938 = vmatpush.msra.mxu0 0.0
  %939 = vmatpush.msra.mxu0 0.0
  %940 = vmatpush.msra.mxu0 0.0
  %941 = vmatpush.msra.mxu0 0.0
  %942 = vmatpush.msra.mxu0 0.0
  %943 = vmatpush.msra.mxu0 0.0
  %944 = vmatpush.msra.mxu0 0.0
  %945 = vmatpush.msra.mxu0 0.0
  %946 = vmatpush.msra.mxu0 0.0
  %947 = vmatpush.msra.mxu0 0.0
  %948 = vmatpush.msra.mxu0 0.0
  %949 = vmatpush.msra.mxu0 0.0
  %950 = vmatpush.msra.mxu0 %v937
  %951 = vmatpush.msra.mxu0 %v936
  %952 = vmatpush.msra.mxu0 %v935
  %953 = vmatpush.msra.mxu0 %v934
  %954 = vmatmul.f32.gmra.mxu0 %v873
  %v955 = vpop.f32.mrf.mxu0
  %v956 = vadd.f32 0.0, %v955
  %957 = vdwg.mxu0
  %958 = vmatpush.msra.mxu0 %v933
  %959 = vmatpush.msra.mxu0 %v932
  %960 = vmatpush.msra.mxu0 %v931
  %961 = vmatpush.msra.mxu0 %v930
  %962 = vmatpush.msra.mxu0 %v929
  %963 = vmatpush.msra.mxu0 %v928
  %964 = vmatpush.msra.mxu0 %v927
  %965 = vmatpush.msra.mxu0 %v926
  %966 = vmatpush.msra.mxu0 %v925
  %967 = vmatpush.msra.mxu0 %v924
  %968 = vmatpush.msra.mxu0 %v923
  %969 = vmatpush.msra.mxu0 %v922
  %970 = vmatpush.msra.mxu0 %v921
  %971 = vmatpush.msra.mxu0 %v920
  %972 = vmatpush.msra.mxu0 %v919
  %973 = vmatpush.msra.mxu0 %v918
  %974 = vmatmul.f32.gmra.mxu0 %v917
  %v975 = vpop.f32.mrf.mxu0
  %v976 = vadd.f32 %v956, %v975
  %977 = vdwg.mxu0
  %v978 = vld [vmem:[%s5] sm:$0x1]
  %v980 = vperm.slane %v978, 0
  %v982 = vadd.f32 %v976, %v980
  %v983 = vxor.u32 %v982, 2147483648
  %v984 = vmul.f32 %v983, 1.442695
  %v985 = vpow.pop %v984
  %v986 = vadd.f32 %v985, 1.0
  %v987 = vrcp.pop %v986
  %v988 = vmul.f32 %v986, %v987
  %v989 = vsub.f32 1.0, %v988
  %v990 = vmul.f32 %v987, %v989
  %v991 = vadd.f32 %v987, %v990
  %vm992 = vweird.f32 %v986
  %vm993 = vweird.f32 %v987
  %vm994 = vmor %vm992, %vm993
  %v995 = vsel %vm994, %v987, %v991
  %v996 = vand.u32 2147483647, %v986
  %vm997 = vcmp.eq.f32.partialorder %v996, 8.507059e+37
  %v998 = vand.u32 %v986, 2147483648
  %v999 = vor.u32 1.1754944e-38, %v998
  %v1000 = vsel %vm997, %v999, %v995
  %v1001 = vmul.f32 1.0, %v1000
  %v1002 = vtanh.pop %v982
  %v1003 = vmul.f32 %v1001, %v855
  %1005 = vrot.lane.b32.xlu0 %v1002, 64
  %v1006 = vpop.permute.xlu0 %1005
  %v1008 = vmul.f32 %v1001, %v1006
  %1010 = vrot.lane.b32.xlu0 %v1008, 32
  %v1011 = vpop.permute.xlu0 %1010
  %v1013 = vadd.f32 %v1003, %v1011
  %v1014 = vtanh.pop %v1013
  %1016 = vrot.lane.b32.xlu0 %v1014, 64
  %v1017 = vpop.permute.xlu0 %1016
  %v1019 = vmul.f32 %v1001, %v1017
  %v1020 = vld [vmem:[%s6] sm:$0xff]
  %v1021 = vld [vmem:[%s6 + $0x8] sm:$0xff]
  %v1022 = vld [vmem:[%s6 + $0x10] sm:$0xff]
  %v1023 = vld [vmem:[%s6 + $0x18] sm:$0xff]
  %v1024 = vld [vmem:[%s7] sm:$0x1]
  %v1026 = vperm.slane %v1024, 0
  %1029 = vrot.lane.b32.xlu0 %v1019, 32
  %v1030 = vpop.permute.xlu0 %1029
  %v1031 = vsel %vm40, %v1030, 0
  %1033 = vmatpush.msra.mxu0 0.0
  %1034 = vmatpush.msra.mxu0 0.0
  %1035 = vmatpush.msra.mxu0 0.0
  %1036 = vmatpush.msra.mxu0 0.0
  %1037 = vmatpush.msra.mxu0 0.0
  %1038 = vmatpush.msra.mxu0 0.0
  %1039 = vmatpush.msra.mxu0 0.0
  %1040 = vmatpush.msra.mxu0 0.0
  %1041 = vmatpush.msra.mxu0 0.0
  %1042 = vmatpush.msra.mxu0 0.0
  %1043 = vmatpush.msra.mxu0 0.0
  %1044 = vmatpush.msra.mxu0 0.0
  %1045 = vmatpush.msra.mxu0 %v1023
  %1046 = vmatpush.msra.mxu0 %v1022
  %1047 = vmatpush.msra.mxu0 %v1021
  %1048 = vmatpush.msra.mxu0 %v1020
  %1049 = vmatmul.f32.gmra.mxu0 %v1031
  %v1050 = vpop.f32.mrf.mxu0
  %v1051 = vadd.f32 %v1026, %v1050
  %1052 = vdwg.mxu0
  %s1053 = scalar_lea.vmem %s8, 24
  %1054 = vst [vmem:[%s1053] sm:$0xff] %v1051
  %1055 = vmax.xlane.f32.xlu0 %v1051
  %v1056 = vpop.xlane.xlu0 %1055
  %vm1057 = vcmp.eq.f32.partialorder %v1051, %v1056
  %v1058 = vsel %vm1057, %v561, 128
  %v1059 = vand.u32 %v1058, 65535
  %v1060 = vshra.s32 %v1058, 16
  %v1061 = vcvt.s32.f32 %v1059
  %v1062 = vcvt.s32.f32 %v1060
  %1063 = vmin.xlane.f32.xlu0 %v1062
  %v1064 = vpop.xlane.xlu0 %1063
  %vm1065 = vcmp.eq.f32.partialorder %v1062, %v1064
  %v1066 = vsel %vm1065, %v1061, inf
  %1067 = vmin.xlane.f32.xlu0 %v1066
  %v1068 = vpop.xlane.xlu0 %1067
  %v1069 = vcvt.f32.s32 %v1068
  %v1070 = vcvt.f32.s32 %v1064
  %v1071 = vshll.u32 %v1070, 16
  %v1072 = vadd.s32 %v1071, %v1069
  %vm1073 = vcmp.eq.s32.totalorder %v561, %v1072
  %v1074 = vsel %vm1073, 1, 0
  %v1075 = vcvt.s32.f32 %v1074
  %v1076 = vld [vmem:[%s3] sm:$0xff]
  %v1077 = vld [vmem:[%s3 + $0x8] sm:$0xff]
  %v1078 = vld [vmem:[%s3 + $0x10] sm:$0xff]
  %v1079 = vld [vmem:[%s3 + $0x18] sm:$0xff]
  %v1080 = vld [vmem:[%s3 + $0x20] sm:$0xff]
  %v1081 = vld [vmem:[%s3 + $0x28] sm:$0xff]
  %v1082 = vld [vmem:[%s3 + $0x30] sm:$0xff]
  %v1083 = vld [vmem:[%s3 + $0x38] sm:$0xff]
  %v1084 = vld [vmem:[%s3 + $0x40] sm:$0xff]
  %v1085 = vld [vmem:[%s3 + $0x48] sm:$0xff]
  %v1086 = vld [vmem:[%s3 + $0x50] sm:$0xff]
  %v1087 = vld [vmem:[%s3 + $0x58] sm:$0xff]
  %v1088 = vld [vmem:[%s3 + $0x60] sm:$0xff]
  %v1089 = vld [vmem:[%s3 + $0x68] sm:$0xff]
  %v1090 = vld [vmem:[%s3 + $0x70] sm:$0xff]
  %v1091 = vld [vmem:[%s3 + $0x78] sm:$0xff]
  %v1092 = vld [vmem:[%s4] sm:$0xff]
  %v1093 = vld [vmem:[%s4 + $0x8] sm:$0xff]
  %v1094 = vld [vmem:[%s4 + $0x10] sm:$0xff]
  %v1095 = vld [vmem:[%s4 + $0x18] sm:$0xff]
  %1096 = vmatpush.msra.mxu0 0.0
  %1097 = vmatpush.msra.mxu0 0.0
  %1098 = vmatpush.msra.mxu0 0.0
  %1099 = vmatpush.msra.mxu0 0.0
  %1100 = vmatpush.msra.mxu0 0.0
  %1101 = vmatpush.msra.mxu0 0.0
  %1102 = vmatpush.msra.mxu0 0.0
  %1103 = vmatpush.msra.mxu0 0.0
  %1104 = vmatpush.msra.mxu0 0.0
  %1105 = vmatpush.msra.mxu0 0.0
  %1106 = vmatpush.msra.mxu0 0.0
  %1107 = vmatpush.msra.mxu0 0.0
  %1108 = vmatpush.msra.mxu0 %v1095
  %1109 = vmatpush.msra.mxu0 %v1094
  %1110 = vmatpush.msra.mxu0 %v1093
  %1111 = vmatpush.msra.mxu0 %v1092
  %1112 = vmatmul.f32.gmra.mxu0 %v1031
  %v1113 = vpop.f32.mrf.mxu0
  %v1114 = vadd.f32 0.0, %v1113
  %1115 = vdwg.mxu0
  %1116 = vmatpush.msra.mxu0 %v1091
  %1117 = vmatpush.msra.mxu0 %v1090
  %1118 = vmatpush.msra.mxu0 %v1089
  %1119 = vmatpush.msra.mxu0 %v1088
  %1120 = vmatpush.msra.mxu0 %v1087
  %1121 = vmatpush.msra.mxu0 %v1086
  %1122 = vmatpush.msra.mxu0 %v1085
  %1123 = vmatpush.msra.mxu0 %v1084
  %1124 = vmatpush.msra.mxu0 %v1083
  %1125 = vmatpush.msra.mxu0 %v1082
  %1126 = vmatpush.msra.mxu0 %v1081
  %1127 = vmatpush.msra.mxu0 %v1080
  %1128 = vmatpush.msra.mxu0 %v1079
  %1129 = vmatpush.msra.mxu0 %v1078
  %1130 = vmatpush.msra.mxu0 %v1077
  %1131 = vmatpush.msra.mxu0 %v1076
  %1132 = vmatmul.f32.gmra.mxu0 %v1075
  %v1133 = vpop.f32.mrf.mxu0
  %v1134 = vadd.f32 %v1114, %v1133
  %1135 = vdwg.mxu0
  %v1136 = vld [vmem:[%s5] sm:$0x1]
  %v1138 = vperm.slane %v1136, 0
  %v1140 = vadd.f32 %v1134, %v1138
  %v1141 = vxor.u32 %v1140, 2147483648
  %v1142 = vmul.f32 %v1141, 1.442695
  %v1143 = vpow.pop %v1142
  %v1144 = vadd.f32 %v1143, 1.0
  %v1145 = vrcp.pop %v1144
  %v1146 = vmul.f32 %v1144, %v1145
  %v1147 = vsub.f32 1.0, %v1146
  %v1148 = vmul.f32 %v1145, %v1147
  %v1149 = vadd.f32 %v1145, %v1148
  %vm1150 = vweird.f32 %v1144
  %vm1151 = vweird.f32 %v1145
  %vm1152 = vmor %vm1150, %vm1151
  %v1153 = vsel %vm1152, %v1145, %v1149
  %v1154 = vand.u32 2147483647, %v1144
  %vm1155 = vcmp.eq.f32.partialorder %v1154, 8.507059e+37
  %v1156 = vand.u32 %v1144, 2147483648
  %v1157 = vor.u32 1.1754944e-38, %v1156
  %v1158 = vsel %vm1155, %v1157, %v1153
  %v1159 = vmul.f32 1.0, %v1158
  %v1160 = vtanh.pop %v1140
  %v1161 = vmul.f32 %v1159, %v1013
  %1163 = vrot.lane.b32.xlu0 %v1160, 64
  %v1164 = vpop.permute.xlu0 %1163
  %v1166 = vmul.f32 %v1159, %v1164
  %1168 = vrot.lane.b32.xlu0 %v1166, 32
  %v1169 = vpop.permute.xlu0 %1168
  %v1171 = vadd.f32 %v1161, %v1169
  %v1172 = vtanh.pop %v1171
  %1174 = vrot.lane.b32.xlu0 %v1172, 64
  %v1175 = vpop.permute.xlu0 %1174
  %v1177 = vmul.f32 %v1159, %v1175
  %v1178 = vld [vmem:[%s6] sm:$0xff]
  %v1179 = vld [vmem:[%s6 + $0x8] sm:$0xff]
  %v1180 = vld [vmem:[%s6 + $0x10] sm:$0xff]
  %v1181 = vld [vmem:[%s6 + $0x18] sm:$0xff]
  %v1182 = vld [vmem:[%s7] sm:$0x1]
  %v1184 = vperm.slane %v1182, 0
  %1187 = vrot.lane.b32.xlu0 %v1177, 32
  %v1188 = vpop.permute.xlu0 %1187
  %v1189 = vsel %vm40, %v1188, 0
  %1191 = vmatpush.msra.mxu0 0.0
  %1192 = vmatpush.msra.mxu0 0.0
  %1193 = vmatpush.msra.mxu0 0.0
  %1194 = vmatpush.msra.mxu0 0.0
  %1195 = vmatpush.msra.mxu0 0.0
  %1196 = vmatpush.msra.mxu0 0.0
  %1197 = vmatpush.msra.mxu0 0.0
  %1198 = vmatpush.msra.mxu0 0.0
  %1199 = vmatpush.msra.mxu0 0.0
  %1200 = vmatpush.msra.mxu0 0.0
  %1201 = vmatpush.msra.mxu0 0.0
  %1202 = vmatpush.msra.mxu0 0.0
  %1203 = vmatpush.msra.mxu0 %v1181
  %1204 = vmatpush.msra.mxu0 %v1180
  %1205 = vmatpush.msra.mxu0 %v1179
  %1206 = vmatpush.msra.mxu0 %v1178
  %1207 = vmatmul.f32.gmra.mxu0 %v1189
  %v1208 = vpop.f32.mrf.mxu0
  %v1209 = vadd.f32 %v1184, %v1208
  %1210 = vdwg.mxu0
  %s1211 = scalar_lea.vmem %s8, 32
  %1212 = vst [vmem:[%s1211] sm:$0xff] %v1209
  %1213 = vmax.xlane.f32.xlu0 %v1209
  %v1214 = vpop.xlane.xlu0 %1213
  %vm1215 = vcmp.eq.f32.partialorder %v1209, %v1214
  %v1216 = vsel %vm1215, %v561, 128
  %v1217 = vand.u32 %v1216, 65535
  %v1218 = vshra.s32 %v1216, 16
  %v1219 = vcvt.s32.f32 %v1217
  %v1220 = vcvt.s32.f32 %v1218
  %1221 = vmin.xlane.f32.xlu0 %v1220
  %v1222 = vpop.xlane.xlu0 %1221
  %vm1223 = vcmp.eq.f32.partialorder %v1220, %v1222
  %v1224 = vsel %vm1223, %v1219, inf
  %1225 = vmin.xlane.f32.xlu0 %v1224
  %v1226 = vpop.xlane.xlu0 %1225
  %v1227 = vcvt.f32.s32 %v1226
  %v1228 = vcvt.f32.s32 %v1222
  %v1229 = vshll.u32 %v1228, 16
  %v1230 = vadd.s32 %v1229, %v1227
  %vm1231 = vcmp.eq.s32.totalorder %v561, %v1230
  %v1232 = vsel %vm1231, 1, 0
  %v1233 = vcvt.s32.f32 %v1232
  %v1234 = vld [vmem:[%s3] sm:$0xff]
  %v1235 = vld [vmem:[%s3 + $0x8] sm:$0xff]
  %v1236 = vld [vmem:[%s3 + $0x10] sm:$0xff]
  %v1237 = vld [vmem:[%s3 + $0x18] sm:$0xff]
  %v1238 = vld [vmem:[%s3 + $0x20] sm:$0xff]
  %v1239 = vld [vmem:[%s3 + $0x28] sm:$0xff]
  %v1240 = vld [vmem:[%s3 + $0x30] sm:$0xff]
  %v1241 = vld [vmem:[%s3 + $0x38] sm:$0xff]
  %v1242 = vld [vmem:[%s3 + $0x40] sm:$0xff]
  %v1243 = vld [vmem:[%s3 + $0x48] sm:$0xff]
  %v1244 = vld [vmem:[%s3 + $0x50] sm:$0xff]
  %v1245 = vld [vmem:[%s3 + $0x58] sm:$0xff]
  %v1246 = vld [vmem:[%s3 + $0x60] sm:$0xff]
  %v1247 = vld [vmem:[%s3 + $0x68] sm:$0xff]
  %v1248 = vld [vmem:[%s3 + $0x70] sm:$0xff]
  %v1249 = vld [vmem:[%s3 + $0x78] sm:$0xff]
  %v1250 = vld [vmem:[%s4] sm:$0xff]
  %v1251 = vld [vmem:[%s4 + $0x8] sm:$0xff]
  %v1252 = vld [vmem:[%s4 + $0x10] sm:$0xff]
  %v1253 = vld [vmem:[%s4 + $0x18] sm:$0xff]
  %1254 = vmatpush.msra.mxu0 0.0
  %1255 = vmatpush.msra.mxu0 0.0
  %1256 = vmatpush.msra.mxu0 0.0
  %1257 = vmatpush.msra.mxu0 0.0
  %1258 = vmatpush.msra.mxu0 0.0
  %1259 = vmatpush.msra.mxu0 0.0
  %1260 = vmatpush.msra.mxu0 0.0
  %1261 = vmatpush.msra.mxu0 0.0
  %1262 = vmatpush.msra.mxu0 0.0
  %1263 = vmatpush.msra.mxu0 0.0
  %1264 = vmatpush.msra.mxu0 0.0
  %1265 = vmatpush.msra.mxu0 0.0
  %1266 = vmatpush.msra.mxu0 %v1253
  %1267 = vmatpush.msra.mxu0 %v1252
  %1268 = vmatpush.msra.mxu0 %v1251
  %1269 = vmatpush.msra.mxu0 %v1250
  %1270 = vmatmul.f32.gmra.mxu0 %v1189
  %v1271 = vpop.f32.mrf.mxu0
  %v1272 = vadd.f32 0.0, %v1271
  %1273 = vdwg.mxu0
  %1274 = vmatpush.msra.mxu0 %v1249
  %1275 = vmatpush.msra.mxu0 %v1248
  %1276 = vmatpush.msra.mxu0 %v1247
  %1277 = vmatpush.msra.mxu0 %v1246
  %1278 = vmatpush.msra.mxu0 %v1245
  %1279 = vmatpush.msra.mxu0 %v1244
  %1280 = vmatpush.msra.mxu0 %v1243
  %1281 = vmatpush.msra.mxu0 %v1242
  %1282 = vmatpush.msra.mxu0 %v1241
  %1283 = vmatpush.msra.mxu0 %v1240
  %1284 = vmatpush.msra.mxu0 %v1239
  %1285 = vmatpush.msra.mxu0 %v1238
  %1286 = vmatpush.msra.mxu0 %v1237
  %1287 = vmatpush.msra.mxu0 %v1236
  %1288 = vmatpush.msra.mxu0 %v1235
  %1289 = vmatpush.msra.mxu0 %v1234
  %1290 = vmatmul.f32.gmra.mxu0 %v1233
  %v1291 = vpop.f32.mrf.mxu0
  %v1292 = vadd.f32 %v1272, %v1291
  %1293 = vdwg.mxu0
  %v1294 = vld [vmem:[%s5] sm:$0x1]
  %v1296 = vperm.slane %v1294, 0
  %v1298 = vadd.f32 %v1292, %v1296
  %v1299 = vxor.u32 %v1298, 2147483648
  %v1300 = vmul.f32 %v1299, 1.442695
  %v1301 = vpow.pop %v1300
  %v1302 = vadd.f32 %v1301, 1.0
  %v1303 = vrcp.pop %v1302
  %v1304 = vmul.f32 %v1302, %v1303
  %v1305 = vsub.f32 1.0, %v1304
  %v1306 = vmul.f32 %v1303, %v1305
  %v1307 = vadd.f32 %v1303, %v1306
  %vm1308 = vweird.f32 %v1302
  %vm1309 = vweird.f32 %v1303
  %vm1310 = vmor %vm1308, %vm1309
  %v1311 = vsel %vm1310, %v1303, %v1307
  %v1312 = vand.u32 2147483647, %v1302
  %vm1313 = vcmp.eq.f32.partialorder %v1312, 8.507059e+37
  %v1314 = vand.u32 %v1302, 2147483648
  %v1315 = vor.u32 1.1754944e-38, %v1314
  %v1316 = vsel %vm1313, %v1315, %v1311
  %v1317 = vmul.f32 1.0, %v1316
  %v1318 = vtanh.pop %v1298
  %v1319 = vmul.f32 %v1317, %v1171
  %1321 = vrot.lane.b32.xlu0 %v1318, 64
  %v1322 = vpop.permute.xlu0 %1321
  %v1324 = vmul.f32 %v1317, %v1322
  %1326 = vrot.lane.b32.xlu0 %v1324, 32
  %v1327 = vpop.permute.xlu0 %1326
  %v1329 = vadd.f32 %v1319, %v1327
  %v1330 = vtanh.pop %v1329
  %1332 = vrot.lane.b32.xlu0 %v1330, 64
  %v1333 = vpop.permute.xlu0 %1332
  %v1335 = vmul.f32 %v1317, %v1333
  %v1336 = vld [vmem:[%s6] sm:$0xff]
  %v1337 = vld [vmem:[%s6 + $0x8] sm:$0xff]
  %v1338 = vld [vmem:[%s6 + $0x10] sm:$0xff]
  %v1339 = vld [vmem:[%s6 + $0x18] sm:$0xff]
  %v1340 = vld [vmem:[%s7] sm:$0x1]
  %v1342 = vperm.slane %v1340, 0
  %1345 = vrot.lane.b32.xlu0 %v1335, 32
  %v1346 = vpop.permute.xlu0 %1345
  %v1347 = vsel %vm40, %v1346, 0
  %1349 = vmatpush.msra.mxu0 0.0
  %1350 = vmatpush.msra.mxu0 0.0
  %1351 = vmatpush.msra.mxu0 0.0
  %1352 = vmatpush.msra.mxu0 0.0
  %1353 = vmatpush.msra.mxu0 0.0
  %1354 = vmatpush.msra.mxu0 0.0
  %1355 = vmatpush.msra.mxu0 0.0
  %1356 = vmatpush.msra.mxu0 0.0
  %1357 = vmatpush.msra.mxu0 0.0
  %1358 = vmatpush.msra.mxu0 0.0
  %1359 = vmatpush.msra.mxu0 0.0
  %1360 = vmatpush.msra.mxu0 0.0
  %1361 = vmatpush.msra.mxu0 %v1339
  %1362 = vmatpush.msra.mxu0 %v1338
  %1363 = vmatpush.msra.mxu0 %v1337
  %1364 = vmatpush.msra.mxu0 %v1336
  %1365 = vmatmul.f32.gmra.mxu0 %v1347
  %v1366 = vpop.f32.mrf.mxu0
  %v1367 = vadd.f32 %v1342, %v1366
  %1368 = vdwg.mxu0
  %s1369 = scalar_lea.vmem %s8, 40
  %1370 = vst [vmem:[%s1369] sm:$0xff] %v1367
  %1371 = vmax.xlane.f32.xlu0 %v1367
  %v1372 = vpop.xlane.xlu0 %1371
  %vm1373 = vcmp.eq.f32.partialorder %v1367, %v1372
  %v1374 = vsel %vm1373, %v561, 128
  %v1375 = vand.u32 %v1374, 65535
  %v1376 = vshra.s32 %v1374, 16
  %v1377 = vcvt.s32.f32 %v1375
  %v1378 = vcvt.s32.f32 %v1376
  %1379 = vmin.xlane.f32.xlu0 %v1378
  %v1380 = vpop.xlane.xlu0 %1379
  %vm1381 = vcmp.eq.f32.partialorder %v1378, %v1380
  %v1382 = vsel %vm1381, %v1377, inf
  %1383 = vmin.xlane.f32.xlu0 %v1382
  %v1384 = vpop.xlane.xlu0 %1383
  %v1385 = vcvt.f32.s32 %v1384
  %v1386 = vcvt.f32.s32 %v1380
  %v1387 = vshll.u32 %v1386, 16
  %v1388 = vadd.s32 %v1387, %v1385
  %vm1389 = vcmp.eq.s32.totalorder %v561, %v1388
  %v1390 = vsel %vm1389, 1, 0
  %v1391 = vcvt.s32.f32 %v1390
  %v1392 = vld [vmem:[%s3] sm:$0xff]
  %v1393 = vld [vmem:[%s3 + $0x8] sm:$0xff]
  %v1394 = vld [vmem:[%s3 + $0x10] sm:$0xff]
  %v1395 = vld [vmem:[%s3 + $0x18] sm:$0xff]
  %v1396 = vld [vmem:[%s3 + $0x20] sm:$0xff]
  %v1397 = vld [vmem:[%s3 + $0x28] sm:$0xff]
  %v1398 = vld [vmem:[%s3 + $0x30] sm:$0xff]
  %v1399 = vld [vmem:[%s3 + $0x38] sm:$0xff]
  %v1400 = vld [vmem:[%s3 + $0x40] sm:$0xff]
  %v1401 = vld [vmem:[%s3 + $0x48] sm:$0xff]
  %v1402 = vld [vmem:[%s3 + $0x50] sm:$0xff]
  %v1403 = vld [vmem:[%s3 + $0x58] sm:$0xff]
  %v1404 = vld [vmem:[%s3 + $0x60] sm:$0xff]
  %v1405 = vld [vmem:[%s3 + $0x68] sm:$0xff]
  %v1406 = vld [vmem:[%s3 + $0x70] sm:$0xff]
  %v1407 = vld [vmem:[%s3 + $0x78] sm:$0xff]
  %v1408 = vld [vmem:[%s4] sm:$0xff]
  %v1409 = vld [vmem:[%s4 + $0x8] sm:$0xff]
  %v1410 = vld [vmem:[%s4 + $0x10] sm:$0xff]
  %v1411 = vld [vmem:[%s4 + $0x18] sm:$0xff]
  %1412 = vmatpush.msra.mxu0 0.0
  %1413 = vmatpush.msra.mxu0 0.0
  %1414 = vmatpush.msra.mxu0 0.0
  %1415 = vmatpush.msra.mxu0 0.0
  %1416 = vmatpush.msra.mxu0 0.0
  %1417 = vmatpush.msra.mxu0 0.0
  %1418 = vmatpush.msra.mxu0 0.0
  %1419 = vmatpush.msra.mxu0 0.0
  %1420 = vmatpush.msra.mxu0 0.0
  %1421 = vmatpush.msra.mxu0 0.0
  %1422 = vmatpush.msra.mxu0 0.0
  %1423 = vmatpush.msra.mxu0 0.0
  %1424 = vmatpush.msra.mxu0 %v1411
  %1425 = vmatpush.msra.mxu0 %v1410
  %1426 = vmatpush.msra.mxu0 %v1409
  %1427 = vmatpush.msra.mxu0 %v1408
  %1428 = vmatmul.f32.gmra.mxu0 %v1347
  %v1429 = vpop.f32.mrf.mxu0
  %v1430 = vadd.f32 0.0, %v1429
  %1431 = vdwg.mxu0
  %1432 = vmatpush.msra.mxu0 %v1407
  %1433 = vmatpush.msra.mxu0 %v1406
  %1434 = vmatpush.msra.mxu0 %v1405
  %1435 = vmatpush.msra.mxu0 %v1404
  %1436 = vmatpush.msra.mxu0 %v1403
  %1437 = vmatpush.msra.mxu0 %v1402
  %1438 = vmatpush.msra.mxu0 %v1401
  %1439 = vmatpush.msra.mxu0 %v1400
  %1440 = vmatpush.msra.mxu0 %v1399
  %1441 = vmatpush.msra.mxu0 %v1398
  %1442 = vmatpush.msra.mxu0 %v1397
  %1443 = vmatpush.msra.mxu0 %v1396
  %1444 = vmatpush.msra.mxu0 %v1395
  %1445 = vmatpush.msra.mxu0 %v1394
  %1446 = vmatpush.msra.mxu0 %v1393
  %1447 = vmatpush.msra.mxu0 %v1392
  %1448 = vmatmul.f32.gmra.mxu0 %v1391
  %v1449 = vpop.f32.mrf.mxu0
  %v1450 = vadd.f32 %v1430, %v1449
  %1451 = vdwg.mxu0
  %v1452 = vld [vmem:[%s5] sm:$0x1]
  %v1454 = vperm.slane %v1452, 0
  %v1456 = vadd.f32 %v1450, %v1454
  %v1457 = vxor.u32 %v1456, 2147483648
  %v1458 = vmul.f32 %v1457, 1.442695
  %v1459 = vpow.pop %v1458
  %v1460 = vadd.f32 %v1459, 1.0
  %v1461 = vrcp.pop %v1460
  %v1462 = vmul.f32 %v1460, %v1461
  %v1463 = vsub.f32 1.0, %v1462
  %v1464 = vmul.f32 %v1461, %v1463
  %v1465 = vadd.f32 %v1461, %v1464
  %vm1466 = vweird.f32 %v1460
  %vm1467 = vweird.f32 %v1461
  %vm1468 = vmor %vm1466, %vm1467
  %v1469 = vsel %vm1468, %v1461, %v1465
  %v1470 = vand.u32 2147483647, %v1460
  %vm1471 = vcmp.eq.f32.partialorder %v1470, 8.507059e+37
  %v1472 = vand.u32 %v1460, 2147483648
  %v1473 = vor.u32 1.1754944e-38, %v1472
  %v1474 = vsel %vm1471, %v1473, %v1469
  %v1475 = vmul.f32 1.0, %v1474
  %v1476 = vtanh.pop %v1456
  %v1477 = vmul.f32 %v1475, %v1329
  %1479 = vrot.lane.b32.xlu0 %v1476, 64
  %v1480 = vpop.permute.xlu0 %1479
  %v1482 = vmul.f32 %v1475, %v1480
  %1484 = vrot.lane.b32.xlu0 %v1482, 32
  %v1485 = vpop.permute.xlu0 %1484
  %v1487 = vadd.f32 %v1477, %v1485
  %v1488 = vtanh.pop %v1487
  %1490 = vrot.lane.b32.xlu0 %v1488, 64
  %v1491 = vpop.permute.xlu0 %1490
  %v1493 = vmul.f32 %v1475, %v1491
  %v1494 = vld [vmem:[%s6] sm:$0xff]
  %v1495 = vld [vmem:[%s6 + $0x8] sm:$0xff]
  %v1496 = vld [vmem:[%s6 + $0x10] sm:$0xff]
  %v1497 = vld [vmem:[%s6 + $0x18] sm:$0xff]
  %v1498 = vld [vmem:[%s7] sm:$0x1]
  %v1500 = vperm.slane %v1498, 0
  %1503 = vrot.lane.b32.xlu0 %v1493, 32
  %v1504 = vpop.permute.xlu0 %1503
  %v1505 = vsel %vm40, %v1504, 0
  %1507 = vmatpush.msra.mxu0 0.0
  %1508 = vmatpush.msra.mxu0 0.0
  %1509 = vmatpush.msra.mxu0 0.0
  %1510 = vmatpush.msra.mxu0 0.0
  %1511 = vmatpush.msra.mxu0 0.0
  %1512 = vmatpush.msra.mxu0 0.0
  %1513 = vmatpush.msra.mxu0 0.0
  %1514 = vmatpush.msra.mxu0 0.0
  %1515 = vmatpush.msra.mxu0 0.0
  %1516 = vmatpush.msra.mxu0 0.0
  %1517 = vmatpush.msra.mxu0 0.0
  %1518 = vmatpush.msra.mxu0 0.0
  %1519 = vmatpush.msra.mxu0 %v1497
  %1520 = vmatpush.msra.mxu0 %v1496
  %1521 = vmatpush.msra.mxu0 %v1495
  %1522 = vmatpush.msra.mxu0 %v1494
  %1523 = vmatmul.f32.gmra.mxu0 %v1505
  %v1524 = vpop.f32.mrf.mxu0
  %v1525 = vadd.f32 %v1500, %v1524
  %1526 = vdwg.mxu0
  %s1527 = scalar_lea.vmem %s8, 48
  %1528 = vst [vmem:[%s1527] sm:$0xff] %v1525
  %1529 = vmax.xlane.f32.xlu0 %v1525
  %v1530 = vpop.xlane.xlu0 %1529
  %vm1531 = vcmp.eq.f32.partialorder %v1525, %v1530
  %v1532 = vsel %vm1531, %v561, 128
  %v1533 = vand.u32 %v1532, 65535
  %v1534 = vshra.s32 %v1532, 16
  %v1535 = vcvt.s32.f32 %v1533
  %v1536 = vcvt.s32.f32 %v1534
  %1537 = vmin.xlane.f32.xlu0 %v1536
  %v1538 = vpop.xlane.xlu0 %1537
  %vm1539 = vcmp.eq.f32.partialorder %v1536, %v1538
  %v1540 = vsel %vm1539, %v1535, inf
  %1541 = vmin.xlane.f32.xlu0 %v1540
  %v1542 = vpop.xlane.xlu0 %1541
  %v1543 = vcvt.f32.s32 %v1542
  %v1544 = vcvt.f32.s32 %v1538
  %v1545 = vshll.u32 %v1544, 16
  %v1546 = vadd.s32 %v1545, %v1543
  %vm1547 = vcmp.eq.s32.totalorder %v561, %v1546
  %v1548 = vsel %vm1547, 1, 0
  %v1549 = vcvt.s32.f32 %v1548
  %v1550 = vld [vmem:[%s3] sm:$0xff]
  %v1551 = vld [vmem:[%s3 + $0x8] sm:$0xff]
  %v1552 = vld [vmem:[%s3 + $0x10] sm:$0xff]
  %v1553 = vld [vmem:[%s3 + $0x18] sm:$0xff]
  %v1554 = vld [vmem:[%s3 + $0x20] sm:$0xff]
  %v1555 = vld [vmem:[%s3 + $0x28] sm:$0xff]
  %v1556 = vld [vmem:[%s3 + $0x30] sm:$0xff]
  %v1557 = vld [vmem:[%s3 + $0x38] sm:$0xff]
  %v1558 = vld [vmem:[%s3 + $0x40] sm:$0xff]
  %v1559 = vld [vmem:[%s3 + $0x48] sm:$0xff]
  %v1560 = vld [vmem:[%s3 + $0x50] sm:$0xff]
  %v1561 = vld [vmem:[%s3 + $0x58] sm:$0xff]
  %v1562 = vld [vmem:[%s3 + $0x60] sm:$0xff]
  %v1563 = vld [vmem:[%s3 + $0x68] sm:$0xff]
  %v1564 = vld [vmem:[%s3 + $0x70] sm:$0xff]
  %v1565 = vld [vmem:[%s3 + $0x78] sm:$0xff]
  %v1566 = vld [vmem:[%s4] sm:$0xff]
  %v1567 = vld [vmem:[%s4 + $0x8] sm:$0xff]
  %v1568 = vld [vmem:[%s4 + $0x10] sm:$0xff]
  %v1569 = vld [vmem:[%s4 + $0x18] sm:$0xff]
  %1570 = vmatpush.msra.mxu0 0.0
  %1571 = vmatpush.msra.mxu0 0.0
  %1572 = vmatpush.msra.mxu0 0.0
  %1573 = vmatpush.msra.mxu0 0.0
  %1574 = vmatpush.msra.mxu0 0.0
  %1575 = vmatpush.msra.mxu0 0.0
  %1576 = vmatpush.msra.mxu0 0.0
  %1577 = vmatpush.msra.mxu0 0.0
  %1578 = vmatpush.msra.mxu0 0.0
  %1579 = vmatpush.msra.mxu0 0.0
  %1580 = vmatpush.msra.mxu0 0.0
  %1581 = vmatpush.msra.mxu0 0.0
  %1582 = vmatpush.msra.mxu0 %v1569
  %1583 = vmatpush.msra.mxu0 %v1568
  %1584 = vmatpush.msra.mxu0 %v1567
  %1585 = vmatpush.msra.mxu0 %v1566
  %1586 = vmatmul.f32.gmra.mxu0 %v1505
  %v1587 = vpop.f32.mrf.mxu0
  %v1588 = vadd.f32 0.0, %v1587
  %1589 = vdwg.mxu0
  %1590 = vmatpush.msra.mxu0 %v1565
  %1591 = vmatpush.msra.mxu0 %v1564
  %1592 = vmatpush.msra.mxu0 %v1563
  %1593 = vmatpush.msra.mxu0 %v1562
  %1594 = vmatpush.msra.mxu0 %v1561
  %1595 = vmatpush.msra.mxu0 %v1560
  %1596 = vmatpush.msra.mxu0 %v1559
  %1597 = vmatpush.msra.mxu0 %v1558
  %1598 = vmatpush.msra.mxu0 %v1557
  %1599 = vmatpush.msra.mxu0 %v1556
  %1600 = vmatpush.msra.mxu0 %v1555
  %1601 = vmatpush.msra.mxu0 %v1554
  %1602 = vmatpush.msra.mxu0 %v1553
  %1603 = vmatpush.msra.mxu0 %v1552
  %1604 = vmatpush.msra.mxu0 %v1551
  %1605 = vmatpush.msra.mxu0 %v1550
  %1606 = vmatmul.f32.gmra.mxu0 %v1549
  %v1607 = vpop.f32.mrf.mxu0
  %v1608 = vadd.f32 %v1588, %v1607
  %1609 = vdwg.mxu0
  %v1610 = vld [vmem:[%s5] sm:$0x1]
  %v1612 = vperm.slane %v1610, 0
  %v1614 = vadd.f32 %v1608, %v1612
  %v1615 = vxor.u32 %v1614, 2147483648
  %v1616 = vmul.f32 %v1615, 1.442695
  %v1617 = vpow.pop %v1616
  %v1618 = vadd.f32 %v1617, 1.0
  %v1619 = vrcp.pop %v1618
  %v1620 = vmul.f32 %v1618, %v1619
  %v1621 = vsub.f32 1.0, %v1620
  %v1622 = vmul.f32 %v1619, %v1621
  %v1623 = vadd.f32 %v1619, %v1622
  %vm1624 = vweird.f32 %v1618
  %vm1625 = vweird.f32 %v1619
  %vm1626 = vmor %vm1624, %vm1625
  %v1627 = vsel %vm1626, %v1619, %v1623
  %v1628 = vand.u32 2147483647, %v1618
  %vm1629 = vcmp.eq.f32.partialorder %v1628, 8.507059e+37
  %v1630 = vand.u32 %v1618, 2147483648
  %v1631 = vor.u32 1.1754944e-38, %v1630
  %v1632 = vsel %vm1629, %v1631, %v1627
  %v1633 = vmul.f32 1.0, %v1632
  %v1634 = vtanh.pop %v1614
  %v1635 = vmul.f32 %v1633, %v1487
  %1637 = vrot.lane.b32.xlu0 %v1634, 64
  %v1638 = vpop.permute.xlu0 %1637
  %v1640 = vmul.f32 %v1633, %v1638
  %1642 = vrot.lane.b32.xlu0 %v1640, 32
  %v1643 = vpop.permute.xlu0 %1642
  %v1645 = vadd.f32 %v1635, %v1643
  %v1646 = vtanh.pop %v1645
  %1648 = vrot.lane.b32.xlu0 %v1646, 64
  %v1649 = vpop.permute.xlu0 %1648
  %v1651 = vmul.f32 %v1633, %v1649
  %v1652 = vld [vmem:[%s6] sm:$0xff]
  %v1653 = vld [vmem:[%s6 + $0x8] sm:$0xff]
  %v1654 = vld [vmem:[%s6 + $0x10] sm:$0xff]
  %v1655 = vld [vmem:[%s6 + $0x18] sm:$0xff]
  %v1656 = vld [vmem:[%s7] sm:$0x1]
  %v1658 = vperm.slane %v1656, 0
  %1661 = vrot.lane.b32.xlu0 %v1651, 32
  %v1662 = vpop.permute.xlu0 %1661
  %v1663 = vsel %vm40, %v1662, 0
  %1665 = vmatpush.msra.mxu0 0.0
  %1666 = vmatpush.msra.mxu0 0.0
  %1667 = vmatpush.msra.mxu0 0.0
  %1668 = vmatpush.msra.mxu0 0.0
  %1669 = vmatpush.msra.mxu0 0.0
  %1670 = vmatpush.msra.mxu0 0.0
  %1671 = vmatpush.msra.mxu0 0.0
  %1672 = vmatpush.msra.mxu0 0.0
  %1673 = vmatpush.msra.mxu0 0.0
  %1674 = vmatpush.msra.mxu0 0.0
  %1675 = vmatpush.msra.mxu0 0.0
  %1676 = vmatpush.msra.mxu0 0.0
  %1677 = vmatpush.msra.mxu0 %v1655
  %1678 = vmatpush.msra.mxu0 %v1654
  %1679 = vmatpush.msra.mxu0 %v1653
  %1680 = vmatpush.msra.mxu0 %v1652
  %1681 = vmatmul.f32.gmra.mxu0 %v1663
  %v1682 = vpop.f32.mrf.mxu0
  %v1683 = vadd.f32 %v1658, %v1682
  %1684 = vdwg.mxu0
  %s1685 = scalar_lea.vmem %s8, 56
  %1686 = vst [vmem:[%s1685] sm:$0xff] %v1683
  // Predicated region
  $region30: #{seq2seq_forward.1} parent=0 // pred_check
    _
  $region31: #{seq2seq_forward.1} parent=0 // pred_check_branch
    %1688 = sbr.rel (0) target = $region33
  $region32: #{seq2seq_forward.1} parent=0 // pred_region
    _
  $region33: #{seq2seq_forward.1} parent=0 // pred_fallthru
    _
  // Predicated region
  $region34: #{seq2seq_forward.1} parent=0 // pred_check
    _
  $region35: #{seq2seq_forward.1} parent=0 // pred_check_branch
    %1690 = sbr.rel (0) target = $region37
  $region36: #{seq2seq_forward.1} parent=0 // pred_region
    _
  $region37: #{seq2seq_forward.1} parent=0 // pred_fallthru
    _

</llo_original>
